<compile_context>
chip_gen: v7x
topology: tpu7x:2x2x1
jax: 0.10.0
libtpu: 0.0.40
codegen_flags: <defaults>
</compile_context>

<pallas_src>
import math
import numpy as np
import jax
import jax.numpy as jnp
from jax.experimental import pallas as pl
from jax.experimental.pallas import tpu as pltpu


def build_pe_table(d_model: int, seq_len: int) -> np.ndarray:
    """Exact reproduction of the PyTorch __init__ loop.

    Requires even d_model and reproduces the original 2*i / 2*(i+1) exponents
    (intentional fidelity to the PyTorch module, not the textbook formula).
    """
    pe = np.zeros((seq_len, d_model), dtype=np.float32)
    for pos in range(seq_len):
        for i in range(0, d_model, 2):
            pe[pos, i] = math.sin(pos / 10000 ** (2 * i / d_model))
            pe[pos, i + 1] = math.cos(pos / 10000 ** (2 * (i + 1) / d_model))
    return pe


def _choose_seq_tile(L: int, D: int, itemsize: int, batch: int,
                     target_bytes: int = 1 << 20, min_grid_steps: int = 8) -> int:
    """Largest multiple-of-8 divisor of L whose (TL, D) block is <= ~1 MiB,
    shrunk (not below 128 rows) until the grid has enough steps to pipeline."""
    divisors = [t for t in range(8, L + 1, 8) if L % t == 0]
    if not divisors:
        return L  # full-axis block is always legal
    fitting = [t for t in divisors if t * D * itemsize <= target_bytes]
    tl = max(fitting) if fitting else min(divisors)
    while batch * (L // tl) < min_grid_steps:
        smaller = [t for t in divisors if t < tl and t >= 128]
        if not smaller:
            break
        tl = max(smaller)
    return tl


def make_pos_enc_kernel(d_model: int, table_len: int):
    scale = math.sqrt(d_model)

    def kernel(ts_ref, x_ref, pe_ref, o_ref):
        # ts_ref : VMEM (1, 1, TL, 1) int32  -- timestamps, sequence on sublanes
        # x_ref  : VMEM (1, TL, D)
        # pe_ref : VMEM (S, D) f32           -- whole table, constant index_map
        # o_ref  : VMEM (1, TL, D)
        idx = ts_ref[0, 0, :, :]                                   # (TL, 1) int32
        idx = jnp.minimum(jnp.maximum(idx, 0), table_len - 1)      # clamp like jnp.take
        tl = idx.shape[0]

        # Vectorized row gather: f32 one-hot + one MXU matmul (exact to f32 via
        # HIGHEST precision; one-hot entries are exactly 0.0 / 1.0).
        pos = jax.lax.broadcasted_iota(jnp.int32, (tl, table_len), 1)   # (TL, S)
        one_hot = (pos == idx).astype(jnp.float32)                      # (TL, S)
        pe_rows = jnp.dot(one_hot, pe_ref[...],
                          preferred_element_type=jnp.float32,
                          precision=jax.lax.Precision.HIGHEST)          # (TL, D)

        # Single vectorized scale + add over the lane-dense tile; no scratch.
        y = scale * x_ref[0, :, :].astype(jnp.float32) + pe_rows
        o_ref[0, :, :] = y.astype(o_ref.dtype)

    return kernel


def positional_encoding(x: jax.Array, time_stamp: jax.Array, pe_table: jax.Array) -> jax.Array:
    """x: (B, L, D) float, time_stamp: (B, L) int, pe_table: (S, D) float32."""
    B, L, D = x.shape
    S, Dp = pe_table.shape
    assert Dp == D, "pe table width must equal d_model"

    itemsize = jnp.dtype(x.dtype).itemsize
    TL = _choose_seq_tile(L, D, itemsize, B)
    grid = (B, L // TL)

    # Sequence axis on sublanes so the one-hot rows need no relayout in-kernel.
    ts4 = time_stamp.astype(jnp.int32).reshape(B, L // TL, TL, 1)

    kernel = make_pos_enc_kernel(D, S)

    cost = pl.CostEstimate(
        flops=2 * B * L * D + 2 * B * L * S * D,           # scale+add, one-hot matmul
        transcendentals=0,
        bytes_accessed=2 * B * L * D * itemsize + S * D * 4 + B * L * 4,
    )

    return pl.pallas_call(
        kernel,
        out_shape=jax.ShapeDtypeStruct((B, L, D), x.dtype),
        grid_spec=pltpu.PrefetchScalarGridSpec(
            num_scalar_prefetch=0,
            grid=grid,
            in_specs=[
                pl.BlockSpec((1, 1, TL, 1), lambda b, lt: (b, lt, 0, 0)),  # timestamps
                pl.BlockSpec((1, TL, D), lambda b, lt: (b, lt, 0)),        # x tile
                pl.BlockSpec((S, D), lambda b, lt: (0, 0)),                # pe table (resident)
            ],
            out_specs=pl.BlockSpec((1, TL, D), lambda b, lt: (b, lt, 0)),
        ),
        compiler_params=pltpu.CompilerParams(
            dimension_semantics=("parallel", "parallel"),
            vmem_limit_bytes=32 * 1024 * 1024,
        ),
        cost_estimate=cost,
    )(ts4, x, pe_table)


if __name__ == "__main__":
    d_model = 128          # lane-dense output (multiple of 128)
    table_len = 128        # seq_len of the PE table
    B, L = 2, 1024         # -> TL = 256, grid = (2, 4): 8 pipeline steps

    pe_table = jnp.asarray(build_pe_table(d_model, table_len))

    key = jax.random.PRNGKey(0)
    kx, kt = jax.random.split(key)
    x = jax.random.normal(kx, (B, L, d_model), dtype=jnp.float32)
    time_stamp = jax.random.randint(kt, (B, L), 0, table_len, dtype=jnp.int32)

    out = jax.block_until_ready(positional_encoding(x, time_stamp, pe_table))

    # Plain-JAX reference (mirrors the PyTorch forward).
    ref = math.sqrt(d_model) * x + jnp.take(pe_table, time_stamp, axis=0)
    np.testing.assert_allclose(np.asarray(out), np.asarray(ref), rtol=1e-5, atol=1e-5)

    print("KERNEL_OK")
</pallas_src>

<mosaic_0001>
module attributes {stable_mosaic.version = 11 : i64} {
  func.func @kernel(%arg0: i32, %arg1: i32, %arg2: memref<1x1x256x1xi32, #tpu.memory_space<vmem>>, %arg3: memref<1x256x128xf32, #tpu.memory_space<vmem>>, %arg4: memref<128x128xf32, #tpu.memory_space<vmem>>, %arg5: memref<1x256x128xf32, #tpu.memory_space<vmem>>) attributes {dimension_semantics = [#tpu.dimension_semantics<parallel>, #tpu.dimension_semantics<parallel>], iteration_bounds = array<i64: 2, 4>, scalar_prefetch = 0 : i64, scratch_operands = 0 : i64, tpu.core_type = #tpu.core_type<tc>, window_params = [{transform_indices = @transform_0, window_bounds = array<i64: 1, 1, 256, 1>}, {transform_indices = @transform_1, window_bounds = array<i64: 1, 256, 128>}, {pipeline_mode = #tpu.pipeline_mode<synchronous>, transform_indices = @transform_2, window_bounds = array<i64: 128, 128>}, {transform_indices = @transform_3, window_bounds = array<i64: 1, 256, 128>}]} {
    %c0 = arith.constant 0 : index
    %c0_0 = arith.constant 0 : index
    %c0_1 = arith.constant 0 : index
    %c0_2 = arith.constant 0 : index
    %0 = vector.load %arg2[%c0, %c0_0, %c0_1, %c0_2] : memref<1x1x256x1xi32, #tpu.memory_space<vmem>>, vector<1x1x256x1xi32>
    %1 = vector.shape_cast %0 : vector<1x1x256x1xi32> to vector<256x1xi32>
    %c0_i32 = arith.constant 0 : i32
    %2 = vector.broadcast %c0_i32 : i32 to vector<256x1xi32>
    %3 = arith.maxsi %1, %2 : vector<256x1xi32>
    %c127_i32 = arith.constant 127 : i32
    %4 = vector.broadcast %c127_i32 : i32 to vector<256x1xi32>
    %5 = arith.minsi %3, %4 : vector<256x1xi32>
    %6 = tpu.iota {dimensions = array<i32: 1>} : vector<256x128xi32>
    %7 = vector.broadcast %5 : vector<256x1xi32> to vector<256x128xi32>
    %8 = arith.cmpi eq, %6, %7 : vector<256x128xi32>
    %9 = arith.extui %8 : vector<256x128xi1> to vector<256x128xi32>
    %10 = arith.sitofp %9 : vector<256x128xi32> to vector<256x128xf32>
    %c0_3 = arith.constant 0 : index
    %c0_4 = arith.constant 0 : index
    %11 = vector.load %arg4[%c0_3, %c0_4] : memref<128x128xf32, #tpu.memory_space<vmem>>, vector<128x128xf32>
    %cst = arith.constant dense<0.000000e+00> : vector<256x128xf32>
    %12 = tpu.matmul %10, %11, %cst {dimension_numbers = #tpu.dot_dimension_numbers<[1], [0], [0], [1], [0, 0, 1, 1], [], []>, precision = #tpu.contract_precision<fp32>} : vector<256x128xf32>, vector<128x128xf32>, vector<256x128xf32> -> vector<256x128xf32>
    %c0_5 = arith.constant 0 : index
    %c0_6 = arith.constant 0 : index
    %c0_7 = arith.constant 0 : index
    %13 = vector.load %arg3[%c0_5, %c0_6, %c0_7] : memref<1x256x128xf32, #tpu.memory_space<vmem>>, vector<1x256x128xf32>
    %14 = vector.shape_cast %13 : vector<1x256x128xf32> to vector<256x128xf32>
    %cst_8 = arith.constant 11.3137083 : f32
    %15 = vector.broadcast %cst_8 : f32 to vector<256x128xf32>
    %16 = arith.mulf %15, %14 : vector<256x128xf32>
    %17 = arith.addf %16, %12 : vector<256x128xf32>
    %c0_9 = arith.constant 0 : index
    %c0_10 = arith.constant 0 : index
    %c0_11 = arith.constant 0 : index
    %18 = vector.load %arg5[%c0_9, %c0_10, %c0_11] : memref<1x256x128xf32, #tpu.memory_space<vmem>>, vector<1x256x128xf32>
    %19 = vector.shape_cast %18 : vector<1x256x128xf32> to vector<256x128xf32>
    %20 = vector.shape_cast %17 : vector<256x128xf32> to vector<1x256x128xf32>
    tpu.vector_store %arg5[%c0_9, %c0_10, %c0_11], %20 {strides = array<i32>} : memref<1x256x128xf32, #tpu.memory_space<vmem>>, vector<1x256x128xf32>,
    return
  }
  func.func @transform_0(%arg0: i32, %arg1: i32) -> (i32, i32, i32, i32) {
    %c0_i32 = arith.constant 0 : i32
    %c0_i32_0 = arith.constant 0 : i32
    %c0_i32_1 = arith.constant 0 : i32
    return %arg0, %arg1, %c0_i32, %c0_i32_0 : i32, i32, i32, i32
  }
  func.func @transform_1(%arg0: i32, %arg1: i32) -> (i32, i32, i32) {
    %c0_i32 = arith.constant 0 : i32
    %c0_i32_0 = arith.constant 0 : i32
    return %arg0, %arg1, %c0_i32 : i32, i32, i32
  }
  func.func @transform_2(%arg0: i32, %arg1: i32) -> (i32, i32) {
    %c0_i32 = arith.constant 0 : i32
    %c0_i32_0 = arith.constant 0 : i32
    %c0_i32_1 = arith.constant 0 : i32
    return %c0_i32, %c0_i32_0 : i32, i32
  }
  func.func @transform_3(%arg0: i32, %arg1: i32) -> (i32, i32, i32) {
    %c0_i32 = arith.constant 0 : i32
    %c0_i32_0 = arith.constant 0 : i32
    return %arg0, %arg1, %c0_i32 : i32, i32, i32
  }
}

</mosaic_0001>

<llo_original>
// kernel: tpu_custom_call.1
$region0: #{tpu_custom_call.1}
  #allocation0 [shape = 'u32[]', space=smem, size = 0x4, offset = 0x4, fixed_abs, tag = 'smem constant byte address 0x4 - core index']
  #allocation1 [shape = 'u32[144,128]{1,0:T(1,128)}', space=vmem, size = 0x12000, scoped, tag = 'internal scratch']
  %s0 = inlined_call_operand.vmem [shape: s32[2,4,256,1], index: 0, kind: input, shape index: {}]
  %s1 = inlined_call_operand.vmem [shape: f32[2,1024,128], index: 1, kind: input, shape index: {}]
  %s2 = inlined_call_operand.hbm [shape: f32[128,128], index: 2, kind: input, shape index: {}]
  %s3 = inlined_call_operand.hbm [shape: f32[2,1024,128], index: 3, kind: output, shape index: {}]
  %s4 = sld [smem:[#allocation0]]
  $region49: #{tpu_custom_call.1} parent=0
    _
  %s6 = ssub.s32 1, %s4
  %s7 = scalar_select 0, %s6, %s4
  $region1: #{tpu_custom_call.1} parent=0
    #allocation2 [shape = 'u8[65536]{0}', space=vmem, size = 0x10000, scoped, tag = 'input window, operand 2, single buffered']
    #allocation3 [shape = 's32[2]{0}', space=sflag, size = 0x8, scoped, tag = 'scoped memory for tpu_custom_call.1']
    #allocation4 [shape = 's32[2]{0}', space=sflag, size = 0x8, scoped, tag = 'scoped memory for tpu_custom_call.1']
    #allocation5 [shape = 'u8[262144]{0}', space=vmem, size = 0x40000, scoped, tag = 'output window, operand 0']
    %8 = vsyncpa [#allocation3], 0
    %9 = vsyncpa [#allocation4], 0
    %s10 = scalar_lea.sflag [#allocation4], 1
    %11 = vsyncpa %s10, 0
    loop: start=0, step=1, limit=10
    $region2: #{tpu_custom_call.1} parent=1 // loop_pre_header
      _
    $region3: #{tpu_custom_call.1} parent=1 // loop_header
      %s13 = sphi 0, %s17
      %p14 = scmp.ge.s32.totalorder %s13, 10
      %s20 = sphi 0, %s32
      %s21 = sphi 0, %s28
      %s22 = sphi 0, %s20
      %s23 = sphi 0, %s21
      %s24 = sphi 0, %s22
      %s25 = sphi 0, %s23
      %s37 = sphi 0, %s39
      %s40 = sphi 0, %s37
      %s41 = sphi 0, %s40
      %s57 = sphi 0, %s41
      %s65 = sphi 0, %s67
      %s68 = sphi 0, %s65
      %s69 = sphi 0, %s68
      %s85 = sphi 0, %s69
      %s89 = sphi 0, %s89
      %s91 = sphi 0, %s89
      %s92 = sphi 0, %s91
      %s106 = sphi 0, %s92
      %s114 = sphi 0, %s116
      %s117 = sphi 0, %s114
      %s118 = sphi 0, %s117
      %s134 = sphi 0, %s118
    $region4: #{tpu_custom_call.1} parent=1 // loop_header_branch
      %16 = sbr.rel (%p14) target = $region8
    $region5: #{tpu_custom_call.1} parent=1 // loop_body
      %s18 = ssub.s32 %s13, 1
      %s19 = ssub.s32 %s13, 2
      %s26 = sadd.s32 1, %s21
      %p27 = scmp.ge.s32.totalorder %s26, 4
      %s28 = scalar_select %p27, 0, %s26
      %s29 = sadd.s32 1, %s20
      %s30 = scalar_select %p27, %s29, %s20
      %p31 = scmp.ge.s32.totalorder %s30, 2
      %s32 = scalar_select %p31, 0, %s30
      %s33 = ssub.s32 %s20, %s32
      %s34 = ssub.s32 %s21, %s28
      %s35 = sor.u32 %s33, %s34
      %p36 = scmp.eq.s32.totalorder %s35, 0
      %s38 = sadd.s32 %s37, 1
      %s39 = scalar_select %p36, %s37, %s38
      %p42 = pneg %p36
      %p43 = scmp.eq.s32.totalorder %s13, 7
      %p44 = por %p42, %p43
      %p45 = scmp.ne.s32.totalorder %s37, %s40
      %p46 = scmp.eq.s32.totalorder %s13, 0
      %p47 = por %p45, %p46
      %p48 = scmp.ne.s32.totalorder %s37, %s40
      %p49 = scmp.eq.s32.totalorder %s18, 7
      %p50 = por %p48, %p49
      %p51 = scmp.ne.s32.totalorder %s40, %s41
      %p52 = scmp.eq.s32.totalorder %s18, 0
      %p53 = por %p51, %p52
      %p54 = scmp.ne.s32.totalorder %s40, %s41
      %p55 = scmp.eq.s32.totalorder %s19, 7
      %p56 = por %p54, %p55
      %p58 = scmp.ne.s32.totalorder %s41, %s57
      %p59 = scmp.eq.s32.totalorder %s19, 0
      %p60 = por %p58, %p59
      %s61 = ssub.s32 %s20, %s32
      %s62 = ssub.s32 %s21, %s28
      %s63 = sor.u32 %s61, %s62
      %p64 = scmp.eq.s32.totalorder %s63, 0
      %s66 = sadd.s32 %s65, 1
      %s67 = scalar_select %p64, %s65, %s66
      %p70 = pneg %p64
      %p71 = scmp.eq.s32.totalorder %s13, 7
      %p72 = por %p70, %p71
      %p73 = scmp.ne.s32.totalorder %s65, %s68
      %p74 = scmp.eq.s32.totalorder %s13, 0
      %p75 = por %p73, %p74
      %p76 = scmp.ne.s32.totalorder %s65, %s68
      %p77 = scmp.eq.s32.totalorder %s18, 7
      %p78 = por %p76, %p77
      %p79 = scmp.ne.s32.totalorder %s68, %s69
      %p80 = scmp.eq.s32.totalorder %s18, 0
      %p81 = por %p79, %p80
      %p82 = scmp.ne.s32.totalorder %s68, %s69
      %p83 = scmp.eq.s32.totalorder %s19, 7
      %p84 = por %p82, %p83
      %p86 = scmp.ne.s32.totalorder %s69, %s85
      %p87 = scmp.eq.s32.totalorder %s19, 0
      %p88 = por %p86, %p87
      %s90 = sadd.s32 %s89, 1
      %p93 = scmp.eq.s32.totalorder %s13, 7
      %p94 = scmp.ne.s32.totalorder %s89, %s91
      %p95 = scmp.eq.s32.totalorder %s13, 0
      %p96 = por %p94, %p95
      %p97 = scmp.ne.s32.totalorder %s89, %s91
      %p98 = scmp.eq.s32.totalorder %s18, 7
      %p99 = por %p97, %p98
      %p100 = scmp.ne.s32.totalorder %s91, %s92
      %p101 = scmp.eq.s32.totalorder %s18, 0
      %p102 = por %p100, %p101
      %p103 = scmp.ne.s32.totalorder %s91, %s92
      %p104 = scmp.eq.s32.totalorder %s19, 7
      %p105 = por %p103, %p104
      %p107 = scmp.ne.s32.totalorder %s92, %s106
      %p108 = scmp.eq.s32.totalorder %s19, 0
      %p109 = por %p107, %p108
      %s110 = ssub.s32 %s20, %s32
      %s111 = ssub.s32 %s21, %s28
      %s112 = sor.u32 %s110, %s111
      %p113 = scmp.eq.s32.totalorder %s112, 0
      %s115 = sadd.s32 %s114, 1
      %s116 = scalar_select %p113, %s114, %s115
      %p119 = pneg %p113
      %p120 = scmp.eq.s32.totalorder %s13, 7
      %p121 = por %p119, %p120
      %p122 = scmp.ne.s32.totalorder %s114, %s117
      %p123 = scmp.eq.s32.totalorder %s13, 0
      %p124 = por %p122, %p123
      %p125 = scmp.ne.s32.totalorder %s114, %s117
      %p126 = scmp.eq.s32.totalorder %s18, 7
      %p127 = por %p125, %p126
      %p128 = scmp.ne.s32.totalorder %s117, %s118
      %p129 = scmp.eq.s32.totalorder %s18, 0
      %p130 = por %p128, %p129
      %p131 = scmp.ne.s32.totalorder %s117, %s118
      %p132 = scmp.eq.s32.totalorder %s19, 7
      %p133 = por %p131, %p132
      %p135 = scmp.ne.s32.totalorder %s118, %s134
      %p136 = scmp.eq.s32.totalorder %s19, 0
      %p137 = por %p135, %p136
      %p138 = scmp.le.s32.totalorder 1, %s13
      %p139 = scmp.lt.s32.totalorder %s13, 9
      %p140 = pnand %p138, %p139
      %p141 = pneg %p140
      // Predicated region
      $region9: #{tpu_custom_call.1} parent=5 // pred_check
        _
      $region10: #{tpu_custom_call.1} parent=5 // pred_check_branch
        %143 = sbr.rel (%p140) target = $region12
      $region11: #{tpu_custom_call.1} parent=5 // pred_region
        %s144 = ssub.s32 %s13, 1
        // Predicated region
        $region13: #{tpu_custom_call.1} parent=11 // pred_check
          %p145 = pneg %p102
        $region14: #{tpu_custom_call.1} parent=11 // pred_check_branch
          %147 = sbr.rel (%p145) target = $region16
        $region15: #{tpu_custom_call.1} parent=11 // pred_region
          %s149 = ssub.s32 2048, 2048
          %150 = vsyncadd [#allocation3], %s149
          %s151 = sshll.u32 [#allocation2], 4
          %s152 = int_to_ptr.vmem [resolvable:$true] %s151
          %157 = dma.hbm_to_vmem [thread:$0]  %s2, 2048, %s152, [#allocation3], 128, 128, 8
        $region16: #{tpu_custom_call.1} parent=11 // pred_fallthru
          _
      $region12: #{tpu_custom_call.1} parent=5 // pred_fallthru
        _
      %p158 = scmp.lt.s32.totalorder %s13, 8
      // Predicated region
      $region17: #{tpu_custom_call.1} parent=5 // pred_check
        %p159 = pneg %p158
      $region18: #{tpu_custom_call.1} parent=5 // pred_check_branch
        %161 = sbr.rel (%p159) target = $region20
      $region19: #{tpu_custom_call.1} parent=5 // pred_region
        // Predicated region
        $region21: #{tpu_custom_call.1} parent=19 // pred_check
          %p162 = pneg %p47
        $region22: #{tpu_custom_call.1} parent=19 // pred_check_branch
          %164 = sbr.rel (%p162) target = $region24
        $region23: #{tpu_custom_call.1} parent=19 // pred_region
          %p165 = scmp.lt.s32.totalorder %s20, 1
          %s166 = scalar_select %p165, %s20, 1
          %p167 = scmp.lt.s32.totalorder %s21, 3
          %s168 = scalar_select %p167, %s21, 3
          %s169 = smul.addr %s168, 32
          %s170 = smul.addr %s166, 128
          %s171 = sadd.s32 %s169, %s170
          %s172 = smul.addr %s171, 8
          %s173 = scalar_lea.vmem %s0, %s172
        $region24: #{tpu_custom_call.1} parent=19 // pred_fallthru
          _
        // Predicated region
        $region25: #{tpu_custom_call.1} parent=19 // pred_check
          %p174 = pneg %p75
        $region26: #{tpu_custom_call.1} parent=19 // pred_check_branch
          %176 = sbr.rel (%p174) target = $region28
        $region27: #{tpu_custom_call.1} parent=19 // pred_region
          %s177 = smul.u32 32, %s21
          %p178 = scmp.lt.s32.totalorder %s20, 1
          %s179 = scalar_select %p178, %s20, 1
          %p180 = scmp.lt.s32.totalorder %s177, 127
          %s181 = scalar_select %p180, %s177, 127
          %s182 = smul.addr %s179, 128
          %s183 = sadd.s32 %s181, %s182
          %s184 = smul.addr %s183, 8
          %s185 = scalar_lea.vmem %s1, %s184
          %s186 = smul.u32 32, %s21
        $region28: #{tpu_custom_call.1} parent=19 // pred_fallthru
          _
      $region20: #{tpu_custom_call.1} parent=5 // pred_fallthru
        _
      %p187 = scmp.le.s32.totalorder 1, %s13
      %p188 = scmp.lt.s32.totalorder %s13, 9
      %p189 = pnand %p187, %p188
      %p190 = pneg %p189
      // Predicated region
      $region29: #{tpu_custom_call.1} parent=5 // pred_check
        _
      $region30: #{tpu_custom_call.1} parent=5 // pred_check_branch
        %192 = sbr.rel (%p189) target = $region32
      $region31: #{tpu_custom_call.1} parent=5 // pred_region
        %s193 = ssub.s32 %s13, 1
        // Predicated region
        $region33: #{tpu_custom_call.1} parent=31 // pred_check
          %p194 = pneg %p102
        $region34: #{tpu_custom_call.1} parent=31 // pred_check_branch
          %196 = sbr.rel (%p194) target = $region36
        $region35: #{tpu_custom_call.1} parent=31 // pred_region
          %197 = dma.done [#allocation3], 2048
        $region36: #{tpu_custom_call.1} parent=31 // pred_fallthru
          _
        %p198 = scmp.lt.s32.totalorder %s22, 1
        %s199 = scalar_select %p198, %s22, 1
        %p200 = scmp.lt.s32.totalorder %s23, 3
        %s201 = scalar_select %p200, %s23, 3
        %s202 = smul.addr %s201, 32
        %s203 = smul.addr %s199, 128
        %s204 = sadd.s32 %s202, %s203
        %s205 = smul.addr %s204, 8
        %s206 = scalar_lea.vmem %s0, %s205
        %p207 = pneg %p53
        %p208 = pneg %p50
        %s209 = smul.u32 32, %s23
        %p210 = scmp.lt.s32.totalorder %s22, 1
        %s211 = scalar_select %p210, %s22, 1
        %p212 = scmp.lt.s32.totalorder %s209, 127
        %s213 = scalar_select %p212, %s209, 127
        %s214 = smul.addr %s211, 128
        %s215 = sadd.s32 %s213, %s214
        %s216 = smul.addr %s215, 8
        %s217 = scalar_lea.vmem %s1, %s216
        %p218 = pneg %p81
        %p219 = pneg %p78
        %p220 = pneg %p102
        %p221 = pneg %p99
        %p222 = pneg %p130
        %p223 = pneg %p127
        %s224 = sand.u32 %s117, 1
        %s225 = scalar_lea.sflag [#allocation4], %s224
        %s226 = sand.u32 %s117, 1
        %s227 = smul.addr %s226, 256
        %s228 = scalar_lea.vmem [#allocation5], %s227
        %p229 = scmp.lt.s32.totalorder %s22, 1
        %s230 = scalar_select %p229, %s22, 1
        %p231 = scmp.lt.s32.totalorder %s23, 3
        %s232 = scalar_select %p231, %s23, 3
        %s233 = smul.addr %s232, 32
        %s234 = smul.addr %s230, 128
        %s235 = sadd.s32 %s233, %s234
        %s236 = smul.addr %s235, 8
        %s237 = scalar_lea.vmem %s0, %s236
        %s238 = smul.u32 32, %s23
        %p239 = scmp.lt.s32.totalorder %s22, 1
        %s240 = scalar_select %p239, %s22, 1
        %p241 = scmp.lt.s32.totalorder %s238, 127
        %s242 = scalar_select %p241, %s238, 127
        %s243 = smul.addr %s240, 128
        %s244 = sadd.s32 %s242, %s243
        %s245 = smul.addr %s244, 8
        %s246 = scalar_lea.vmem %s1, %s245
        %s247 = smul.u32 32, %s23
        %s248 = smul.u32 32, %s23
        %v249 = vld [vmem:[%s237] sm:$0xff]
        %v250 = vld [vmem:[%s237 + $0x8] sm:$0xff]
        %v251 = vld [vmem:[%s237 + $0x10] sm:$0xff]
        %v252 = vld [vmem:[%s237 + $0x18] sm:$0xff]
        %v253 = vld [vmem:[%s237 + $0x20] sm:$0xff]
        %v254 = vld [vmem:[%s237 + $0x28] sm:$0xff]
        %v255 = vld [vmem:[%s237 + $0x30] sm:$0xff]
        %v256 = vld [vmem:[%s237 + $0x38] sm:$0xff]
        %v257 = vld [vmem:[%s237 + $0x40] sm:$0xff]
        %v258 = vld [vmem:[%s237 + $0x48] sm:$0xff]
        %v259 = vld [vmem:[%s237 + $0x50] sm:$0xff]
        %v260 = vld [vmem:[%s237 + $0x58] sm:$0xff]
        %v261 = vld [vmem:[%s237 + $0x60] sm:$0xff]
        %v262 = vld [vmem:[%s237 + $0x68] sm:$0xff]
        %v263 = vld [vmem:[%s237 + $0x70] sm:$0xff]
        %v264 = vld [vmem:[%s237 + $0x78] sm:$0xff]
        %v265 = vld [vmem:[%s237 + $0x80] sm:$0xff]
        %v266 = vld [vmem:[%s237 + $0x88] sm:$0xff]
        %v267 = vld [vmem:[%s237 + $0x90] sm:$0xff]
        %v268 = vld [vmem:[%s237 + $0x98] sm:$0xff]
        %v269 = vld [vmem:[%s237 + $0xa0] sm:$0xff]
        %v270 = vld [vmem:[%s237 + $0xa8] sm:$0xff]
        %v271 = vld [vmem:[%s237 + $0xb0] sm:$0xff]
        %v272 = vld [vmem:[%s237 + $0xb8] sm:$0xff]
        %v273 = vld [vmem:[%s237 + $0xc0] sm:$0xff]
        %v274 = vld [vmem:[%s237 + $0xc8] sm:$0xff]
        %v275 = vld [vmem:[%s237 + $0xd0] sm:$0xff]
        %v276 = vld [vmem:[%s237 + $0xd8] sm:$0xff]
        %v277 = vld [vmem:[%s237 + $0xe0] sm:$0xff]
        %v278 = vld [vmem:[%s237 + $0xe8] sm:$0xff]
        %v279 = vld [vmem:[%s237 + $0xf0] sm:$0xff]
        %v280 = vld [vmem:[%s237 + $0xf8] sm:$0xff]
        %vm281 = vcmp.gt.s32.totalorder %v249, 0
        %v282 = vsel %vm281, %v249, 0
        %vm283 = vcmp.gt.s32.totalorder %v250, 0
        %v284 = vsel %vm283, %v250, 0
        %vm285 = vcmp.gt.s32.totalorder %v251, 0
        %v286 = vsel %vm285, %v251, 0
        %vm287 = vcmp.gt.s32.totalorder %v252, 0
        %v288 = vsel %vm287, %v252, 0
        %vm289 = vcmp.gt.s32.totalorder %v253, 0
        %v290 = vsel %vm289, %v253, 0
        %vm291 = vcmp.gt.s32.totalorder %v254, 0
        %v292 = vsel %vm291, %v254, 0
        %vm293 = vcmp.gt.s32.totalorder %v255, 0
        %v294 = vsel %vm293, %v255, 0
        %vm295 = vcmp.gt.s32.totalorder %v256, 0
        %v296 = vsel %vm295, %v256, 0
        %vm297 = vcmp.gt.s32.totalorder %v257, 0
        %v298 = vsel %vm297, %v257, 0
        %vm299 = vcmp.gt.s32.totalorder %v258, 0
        %v300 = vsel %vm299, %v258, 0
        %vm301 = vcmp.gt.s32.totalorder %v259, 0
        %v302 = vsel %vm301, %v259, 0
        %vm303 = vcmp.gt.s32.totalorder %v260, 0
        %v304 = vsel %vm303, %v260, 0
        %vm305 = vcmp.gt.s32.totalorder %v261, 0
        %v306 = vsel %vm305, %v261, 0
        %vm307 = vcmp.gt.s32.totalorder %v262, 0
        %v308 = vsel %vm307, %v262, 0
        %vm309 = vcmp.gt.s32.totalorder %v263, 0
        %v310 = vsel %vm309, %v263, 0
        %vm311 = vcmp.gt.s32.totalorder %v264, 0
        %v312 = vsel %vm311, %v264, 0
        %vm313 = vcmp.gt.s32.totalorder %v265, 0
        %v314 = vsel %vm313, %v265, 0
        %vm315 = vcmp.gt.s32.totalorder %v266, 0
        %v316 = vsel %vm315, %v266, 0
        %vm317 = vcmp.gt.s32.totalorder %v267, 0
        %v318 = vsel %vm317, %v267, 0
        %vm319 = vcmp.gt.s32.totalorder %v268, 0
        %v320 = vsel %vm319, %v268, 0
        %vm321 = vcmp.gt.s32.totalorder %v269, 0
        %v322 = vsel %vm321, %v269, 0
        %vm323 = vcmp.gt.s32.totalorder %v270, 0
        %v324 = vsel %vm323, %v270, 0
        %vm325 = vcmp.gt.s32.totalorder %v271, 0
        %v326 = vsel %vm325, %v271, 0
        %vm327 = vcmp.gt.s32.totalorder %v272, 0
        %v328 = vsel %vm327, %v272, 0
        %vm329 = vcmp.gt.s32.totalorder %v273, 0
        %v330 = vsel %vm329, %v273, 0
        %vm331 = vcmp.gt.s32.totalorder %v274, 0
        %v332 = vsel %vm331, %v274, 0
        %vm333 = vcmp.gt.s32.totalorder %v275, 0
        %v334 = vsel %vm333, %v275, 0
        %vm335 = vcmp.gt.s32.totalorder %v276, 0
        %v336 = vsel %vm335, %v276, 0
        %vm337 = vcmp.gt.s32.totalorder %v277, 0
        %v338 = vsel %vm337, %v277, 0
        %vm339 = vcmp.gt.s32.totalorder %v278, 0
        %v340 = vsel %vm339, %v278, 0
        %vm341 = vcmp.gt.s32.totalorder %v279, 0
        %v342 = vsel %vm341, %v279, 0
        %vm343 = vcmp.gt.s32.totalorder %v280, 0
        %v344 = vsel %vm343, %v280, 0
        %vm345 = vcmp.lt.s32.totalorder %v282, 127
        %v346 = vsel %vm345, %v282, 127
        %vm347 = vcmp.lt.s32.totalorder %v284, 127
        %v348 = vsel %vm347, %v284, 127
        %vm349 = vcmp.lt.s32.totalorder %v286, 127
        %v350 = vsel %vm349, %v286, 127
        %vm351 = vcmp.lt.s32.totalorder %v288, 127
        %v352 = vsel %vm351, %v288, 127
        %vm353 = vcmp.lt.s32.totalorder %v290, 127
        %v354 = vsel %vm353, %v290, 127
        %vm355 = vcmp.lt.s32.totalorder %v292, 127
        %v356 = vsel %vm355, %v292, 127
        %vm357 = vcmp.lt.s32.totalorder %v294, 127
        %v358 = vsel %vm357, %v294, 127
        %vm359 = vcmp.lt.s32.totalorder %v296, 127
        %v360 = vsel %vm359, %v296, 127
        %vm361 = vcmp.lt.s32.totalorder %v298, 127
        %v362 = vsel %vm361, %v298, 127
        %vm363 = vcmp.lt.s32.totalorder %v300, 127
        %v364 = vsel %vm363, %v300, 127
        %vm365 = vcmp.lt.s32.totalorder %v302, 127
        %v366 = vsel %vm365, %v302, 127
        %vm367 = vcmp.lt.s32.totalorder %v304, 127
        %v368 = vsel %vm367, %v304, 127
        %vm369 = vcmp.lt.s32.totalorder %v306, 127
        %v370 = vsel %vm369, %v306, 127
        %vm371 = vcmp.lt.s32.totalorder %v308, 127
        %v372 = vsel %vm371, %v308, 127
        %vm373 = vcmp.lt.s32.totalorder %v310, 127
        %v374 = vsel %vm373, %v310, 127
        %vm375 = vcmp.lt.s32.totalorder %v312, 127
        %v376 = vsel %vm375, %v312, 127
        %vm377 = vcmp.lt.s32.totalorder %v314, 127
        %v378 = vsel %vm377, %v314, 127
        %vm379 = vcmp.lt.s32.totalorder %v316, 127
        %v380 = vsel %vm379, %v316, 127
        %vm381 = vcmp.lt.s32.totalorder %v318, 127
        %v382 = vsel %vm381, %v318, 127
        %vm383 = vcmp.lt.s32.totalorder %v320, 127
        %v384 = vsel %vm383, %v320, 127
        %vm385 = vcmp.lt.s32.totalorder %v322, 127
        %v386 = vsel %vm385, %v322, 127
        %vm387 = vcmp.lt.s32.totalorder %v324, 127
        %v388 = vsel %vm387, %v324, 127
        %vm389 = vcmp.lt.s32.totalorder %v326, 127
        %v390 = vsel %vm389, %v326, 127
        %vm391 = vcmp.lt.s32.totalorder %v328, 127
        %v392 = vsel %vm391, %v328, 127
        %vm393 = vcmp.lt.s32.totalorder %v330, 127
        %v394 = vsel %vm393, %v330, 127
        %vm395 = vcmp.lt.s32.totalorder %v332, 127
        %v396 = vsel %vm395, %v332, 127
        %vm397 = vcmp.lt.s32.totalorder %v334, 127
        %v398 = vsel %vm397, %v334, 127
        %vm399 = vcmp.lt.s32.totalorder %v336, 127
        %v400 = vsel %vm399, %v336, 127
        %vm401 = vcmp.lt.s32.totalorder %v338, 127
        %v402 = vsel %vm401, %v338, 127
        %vm403 = vcmp.lt.s32.totalorder %v340, 127
        %v404 = vsel %vm403, %v340, 127
        %vm405 = vcmp.lt.s32.totalorder %v342, 127
        %v406 = vsel %vm405, %v342, 127
        %vm407 = vcmp.lt.s32.totalorder %v344, 127
        %v408 = vsel %vm407, %v344, 127
        %v409 = vlaneseq
        %v410 = vand.u32 %v409, 127
        %411 = vset.pattern.permute.xlu0 0
        %412 = vperm.xlu0 %411, %v346
        %v413 = vpop.permute.xlu0 %412
        %414 = vset.pattern.permute.xlu0 0
        %415 = vperm.xlu0 %414, %v348
        %v416 = vpop.permute.xlu0 %415
        %417 = vset.pattern.permute.xlu0 0
        %418 = vperm.xlu0 %417, %v350
        %v419 = vpop.permute.xlu0 %418
        %420 = vset.pattern.permute.xlu0 0
        %421 = vperm.xlu0 %420, %v352
        %v422 = vpop.permute.xlu0 %421
        %423 = vset.pattern.permute.xlu0 0
        %424 = vperm.xlu0 %423, %v354
        %v425 = vpop.permute.xlu0 %424
        %426 = vset.pattern.permute.xlu0 0
        %427 = vperm.xlu0 %426, %v356
        %v428 = vpop.permute.xlu0 %427
        %429 = vset.pattern.permute.xlu0 0
        %430 = vperm.xlu0 %429, %v358
        %v431 = vpop.permute.xlu0 %430
        %432 = vset.pattern.permute.xlu0 0
        %433 = vperm.xlu0 %432, %v360
        %v434 = vpop.permute.xlu0 %433
        %435 = vset.pattern.permute.xlu0 0
        %436 = vperm.xlu0 %435, %v362
        %v437 = vpop.permute.xlu0 %436
        %438 = vset.pattern.permute.xlu0 0
        %439 = vperm.xlu0 %438, %v364
        %v440 = vpop.permute.xlu0 %439
        %441 = vset.pattern.permute.xlu0 0
        %442 = vperm.xlu0 %441, %v366
        %v443 = vpop.permute.xlu0 %442
        %444 = vset.pattern.permute.xlu0 0
        %445 = vperm.xlu0 %444, %v368
        %v446 = vpop.permute.xlu0 %445
        %447 = vset.pattern.permute.xlu0 0
        %448 = vperm.xlu0 %447, %v370
        %v449 = vpop.permute.xlu0 %448
        %450 = vset.pattern.permute.xlu0 0
        %451 = vperm.xlu0 %450, %v372
        %v452 = vpop.permute.xlu0 %451
        %453 = vset.pattern.permute.xlu0 0
        %454 = vperm.xlu0 %453, %v374
        %v455 = vpop.permute.xlu0 %454
        %456 = vset.pattern.permute.xlu0 0
        %457 = vperm.xlu0 %456, %v376
        %v458 = vpop.permute.xlu0 %457
        %459 = vset.pattern.permute.xlu0 0
        %460 = vperm.xlu0 %459, %v378
        %v461 = vpop.permute.xlu0 %460
        %462 = vset.pattern.permute.xlu0 0
        %463 = vperm.xlu0 %462, %v380
        %v464 = vpop.permute.xlu0 %463
        %465 = vset.pattern.permute.xlu0 0
        %466 = vperm.xlu0 %465, %v382
        %v467 = vpop.permute.xlu0 %466
        %468 = vset.pattern.permute.xlu0 0
        %469 = vperm.xlu0 %468, %v384
        %v470 = vpop.permute.xlu0 %469
        %471 = vset.pattern.permute.xlu0 0
        %472 = vperm.xlu0 %471, %v386
        %v473 = vpop.permute.xlu0 %472
        %474 = vset.pattern.permute.xlu0 0
        %475 = vperm.xlu0 %474, %v388
        %v476 = vpop.permute.xlu0 %475
        %477 = vset.pattern.permute.xlu0 0
        %478 = vperm.xlu0 %477, %v390
        %v479 = vpop.permute.xlu0 %478
        %480 = vset.pattern.permute.xlu0 0
        %481 = vperm.xlu0 %480, %v392
        %v482 = vpop.permute.xlu0 %481
        %483 = vset.pattern.permute.xlu0 0
        %484 = vperm.xlu0 %483, %v394
        %v485 = vpop.permute.xlu0 %484
        %486 = vset.pattern.permute.xlu0 0
        %487 = vperm.xlu0 %486, %v396
        %v488 = vpop.permute.xlu0 %487
        %489 = vset.pattern.permute.xlu0 0
        %490 = vperm.xlu0 %489, %v398
        %v491 = vpop.permute.xlu0 %490
        %492 = vset.pattern.permute.xlu0 0
        %493 = vperm.xlu0 %492, %v400
        %v494 = vpop.permute.xlu0 %493
        %495 = vset.pattern.permute.xlu0 0
        %496 = vperm.xlu0 %495, %v402
        %v497 = vpop.permute.xlu0 %496
        %498 = vset.pattern.permute.xlu0 0
        %499 = vperm.xlu0 %498, %v404
        %v500 = vpop.permute.xlu0 %499
        %501 = vset.pattern.permute.xlu0 0
        %502 = vperm.xlu0 %501, %v406
        %v503 = vpop.permute.xlu0 %502
        %504 = vset.pattern.permute.xlu0 0
        %505 = vperm.xlu0 %504, %v408
        %v506 = vpop.permute.xlu0 %505
        %vm507 = vcmp.eq.s32.totalorder %v410, %v413
        %vm508 = vcmp.eq.s32.totalorder %v410, %v416
        %vm509 = vcmp.eq.s32.totalorder %v410, %v419
        %vm510 = vcmp.eq.s32.totalorder %v410, %v422
        %vm511 = vcmp.eq.s32.totalorder %v410, %v425
        %vm512 = vcmp.eq.s32.totalorder %v410, %v428
        %vm513 = vcmp.eq.s32.totalorder %v410, %v431
        %vm514 = vcmp.eq.s32.totalorder %v410, %v434
        %vm515 = vcmp.eq.s32.totalorder %v410, %v437
        %vm516 = vcmp.eq.s32.totalorder %v410, %v440
        %vm517 = vcmp.eq.s32.totalorder %v410, %v443
        %vm518 = vcmp.eq.s32.totalorder %v410, %v446
        %vm519 = vcmp.eq.s32.totalorder %v410, %v449
        %vm520 = vcmp.eq.s32.totalorder %v410, %v452
        %vm521 = vcmp.eq.s32.totalorder %v410, %v455
        %vm522 = vcmp.eq.s32.totalorder %v410, %v458
        %vm523 = vcmp.eq.s32.totalorder %v410, %v461
        %vm524 = vcmp.eq.s32.totalorder %v410, %v464
        %vm525 = vcmp.eq.s32.totalorder %v410, %v467
        %vm526 = vcmp.eq.s32.totalorder %v410, %v470
        %vm527 = vcmp.eq.s32.totalorder %v410, %v473
        %vm528 = vcmp.eq.s32.totalorder %v410, %v476
        %vm529 = vcmp.eq.s32.totalorder %v410, %v479
        %vm530 = vcmp.eq.s32.totalorder %v410, %v482
        %vm531 = vcmp.eq.s32.totalorder %v410, %v485
        %vm532 = vcmp.eq.s32.totalorder %v410, %v488
        %vm533 = vcmp.eq.s32.totalorder %v410, %v491
        %vm534 = vcmp.eq.s32.totalorder %v410, %v494
        %vm535 = vcmp.eq.s32.totalorder %v410, %v497
        %vm536 = vcmp.eq.s32.totalorder %v410, %v500
        %vm537 = vcmp.eq.s32.totalorder %v410, %v503
        %vm538 = vcmp.eq.s32.totalorder %v410, %v506
        %v539 = vsel %vm507, 1, 0
        %v540 = vsel %vm508, 1, 0
        %v541 = vsel %vm509, 1, 0
        %v542 = vsel %vm510, 1, 0
        %v543 = vsel %vm511, 1, 0
        %v544 = vsel %vm512, 1, 0
        %v545 = vsel %vm513, 1, 0
        %v546 = vsel %vm514, 1, 0
        %v547 = vsel %vm515, 1, 0
        %v548 = vsel %vm516, 1, 0
        %v549 = vsel %vm517, 1, 0
        %v550 = vsel %vm518, 1, 0
        %v551 = vsel %vm519, 1, 0
        %v552 = vsel %vm520, 1, 0
        %v553 = vsel %vm521, 1, 0
        %v554 = vsel %vm522, 1, 0
        %v555 = vsel %vm523, 1, 0
        %v556 = vsel %vm524, 1, 0
        %v557 = vsel %vm525, 1, 0
        %v558 = vsel %vm526, 1, 0
        %v559 = vsel %vm527, 1, 0
        %v560 = vsel %vm528, 1, 0
        %v561 = vsel %vm529, 1, 0
        %v562 = vsel %vm530, 1, 0
        %v563 = vsel %vm531, 1, 0
        %v564 = vsel %vm532, 1, 0
        %v565 = vsel %vm533, 1, 0
        %v566 = vsel %vm534, 1, 0
        %v567 = vsel %vm535, 1, 0
        %v568 = vsel %vm536, 1, 0
        %v569 = vsel %vm537, 1, 0
        %v570 = vsel %vm538, 1, 0
        %v571 = vcvt.s32.f32 %v539
        %v572 = vcvt.s32.f32 %v540
        %v573 = vcvt.s32.f32 %v541
        %v574 = vcvt.s32.f32 %v542
        %v575 = vcvt.s32.f32 %v543
        %v576 = vcvt.s32.f32 %v544
        %v577 = vcvt.s32.f32 %v545
        %v578 = vcvt.s32.f32 %v546
        %v579 = vcvt.s32.f32 %v547
        %v580 = vcvt.s32.f32 %v548
        %v581 = vcvt.s32.f32 %v549
        %v582 = vcvt.s32.f32 %v550
        %v583 = vcvt.s32.f32 %v551
        %v584 = vcvt.s32.f32 %v552
        %v585 = vcvt.s32.f32 %v553
        %v586 = vcvt.s32.f32 %v554
        %v587 = vcvt.s32.f32 %v555
        %v588 = vcvt.s32.f32 %v556
        %v589 = vcvt.s32.f32 %v557
        %v590 = vcvt.s32.f32 %v558
        %v591 = vcvt.s32.f32 %v559
        %v592 = vcvt.s32.f32 %v560
        %v593 = vcvt.s32.f32 %v561
        %v594 = vcvt.s32.f32 %v562
        %v595 = vcvt.s32.f32 %v563
        %v596 = vcvt.s32.f32 %v564
        %v597 = vcvt.s32.f32 %v565
        %v598 = vcvt.s32.f32 %v566
        %v599 = vcvt.s32.f32 %v567
        %v600 = vcvt.s32.f32 %v568
        %v601 = vcvt.s32.f32 %v569
        %v602 = vcvt.s32.f32 %v570
        %v603 = vld [vmem:[#allocation2] sm:$0xff]
        %v604 = vld [vmem:[#allocation2 + $0x8] sm:$0xff]
        %v605 = vld [vmem:[#allocation2 + $0x10] sm:$0xff]
        %v606 = vld [vmem:[#allocation2 + $0x18] sm:$0xff]
        %v607 = vld [vmem:[#allocation2 + $0x20] sm:$0xff]
        %v608 = vld [vmem:[#allocation2 + $0x28] sm:$0xff]
        %v609 = vld [vmem:[#allocation2 + $0x30] sm:$0xff]
        %v610 = vld [vmem:[#allocation2 + $0x38] sm:$0xff]
        %v611 = vld [vmem:[#allocation2 + $0x40] sm:$0xff]
        %v612 = vld [vmem:[#allocation2 + $0x48] sm:$0xff]
        %v613 = vld [vmem:[#allocation2 + $0x50] sm:$0xff]
        %v614 = vld [vmem:[#allocation2 + $0x58] sm:$0xff]
        %v615 = vld [vmem:[#allocation2 + $0x60] sm:$0xff]
        %v616 = vld [vmem:[#allocation2 + $0x68] sm:$0xff]
        %v617 = vld [vmem:[#allocation2 + $0x70] sm:$0xff]
        %v618 = vld [vmem:[#allocation2 + $0x78] sm:$0xff]
        %619 = vmatprep.subr.mxu0 0.0
        %v620 = vand.u32 %v603, 4294901760
        %621 = vmatpush1.msra.mxu0 %v620
        %622 = vmatprep.subr.mxu0 0.0
        %v623 = vand.u32 %v604, 4294901760
        %624 = vmatpush1.msra.mxu0 %v623
        %625 = vmatprep.subr.mxu0 0.0
        %v626 = vand.u32 %v605, 4294901760
        %627 = vmatpush1.msra.mxu0 %v626
        %628 = vmatprep.subr.mxu0 0.0
        %v629 = vand.u32 %v606, 4294901760
        %630 = vmatpush1.msra.mxu0 %v629
        %631 = vmatprep.subr.mxu0 0.0
        %v632 = vand.u32 %v607, 4294901760
        %633 = vmatpush1.msra.mxu0 %v632
        %634 = vmatprep.subr.mxu0 0.0
        %v635 = vand.u32 %v608, 4294901760
        %636 = vmatpush1.msra.mxu0 %v635
        %637 = vmatprep.subr.mxu0 0.0
        %v638 = vand.u32 %v609, 4294901760
        %639 = vmatpush1.msra.mxu0 %v638
        %640 = vmatprep.subr.mxu0 0.0
        %v641 = vand.u32 %v610, 4294901760
        %642 = vmatpush1.msra.mxu0 %v641
        %643 = vmatprep.subr.mxu0 0.0
        %v644 = vand.u32 %v611, 4294901760
        %645 = vmatpush1.msra.mxu0 %v644
        %646 = vmatprep.subr.mxu0 0.0
        %v647 = vand.u32 %v612, 4294901760
        %648 = vmatpush1.msra.mxu0 %v647
        %649 = vmatprep.subr.mxu0 0.0
        %v650 = vand.u32 %v613, 4294901760
        %651 = vmatpush1.msra.mxu0 %v650
        %652 = vmatprep.subr.mxu0 0.0
        %v653 = vand.u32 %v614, 4294901760
        %654 = vmatpush1.msra.mxu0 %v653
        %655 = vmatprep.subr.mxu0 0.0
        %v656 = vand.u32 %v615, 4294901760
        %657 = vmatpush1.msra.mxu0 %v656
        %658 = vmatprep.subr.mxu0 0.0
        %v659 = vand.u32 %v616, 4294901760
        %660 = vmatpush1.msra.mxu0 %v659
        %661 = vmatprep.subr.mxu0 0.0
        %v662 = vand.u32 %v617, 4294901760
        %663 = vmatpush1.msra.mxu0 %v662
        %664 = vmatprep.subr.mxu0 0.0
        %v665 = vand.u32 %v618, 4294901760
        %666 = vmatpush1.msra.mxu0 %v665
        %667 = vmatprep.subr.mxu0 0.0
        %668 = vmatpush1.msra.mxu0 0.0
        %669 = vmatprep.subr.mxu0 0.0
        %670 = vmatpush1.msra.mxu0 0.0
        %671 = vmatprep.subr.mxu0 0.0
        %672 = vmatpush1.msra.mxu0 0.0
        %673 = vmatprep.subr.mxu0 0.0
        %674 = vmatpush1.msra.mxu0 0.0
        %675 = vmatprep.subr.mxu0 0.0
        %676 = vmatpush1.msra.mxu0 0.0
        %677 = vmatprep.subr.mxu0 0.0
        %678 = vmatpush1.msra.mxu0 0.0
        %679 = vmatprep.subr.mxu0 0.0
        %680 = vmatpush1.msra.mxu0 0.0
        %681 = vmatprep.subr.mxu0 0.0
        %682 = vmatpush1.msra.mxu0 0.0
        %683 = vmatprep.subr.mxu0 0.0
        %684 = vmatpush1.msra.mxu0 0.0
        %685 = vmatprep.subr.mxu0 0.0
        %686 = vmatpush1.msra.mxu0 0.0
        %687 = vmatprep.subr.mxu0 0.0
        %688 = vmatpush1.msra.mxu0 0.0
        %689 = vmatprep.subr.mxu0 0.0
        %690 = vmatpush1.msra.mxu0 0.0
        %691 = vmatprep.subr.mxu0 0.0
        %692 = vmatpush1.msra.mxu0 0.0
        %693 = vmatprep.subr.mxu0 0.0
        %694 = vmatpush1.msra.mxu0 0.0
        %695 = vmatprep.subr.mxu0 0.0
        %696 = vmatpush1.msra.mxu0 0.0
        %697 = vmatprep.subr.mxu0 0.0
        %698 = vmatpush1.msra.mxu0 0.0
        %699 = vmatprep.mubr.f32.mxu0 0.0
        %v700 = vand.u32 %v571, 4294901760
        %v701 = vsub.f32 %v571, %v700
        %v702 = vand.u32 %v701, 4294901760
        %v703 = vsub.f32 %v701, %v702
        %v704 = vand.u32 %v703, 4294901760
        %705 = vmatmul.mubr.f32.gmra.mrb[0].mxu0 %v704
        %v706 = vpop.f32.mrb[0].mxu0
        %v707 = vadd.f32 0.0, %v706
        %v708 = vpop.f32.mrb[0].mxu0
        %709 = vmatprep.mubr.f32.mxu0 0.0
        %v710 = vand.u32 %v572, 4294901760
        %v711 = vsub.f32 %v572, %v710
        %v712 = vand.u32 %v711, 4294901760
        %v713 = vsub.f32 %v711, %v712
        %v714 = vand.u32 %v713, 4294901760
        %715 = vmatmul.mubr.f32.gmra.mrb[0].mxu0 %v714
        %v716 = vpop.f32.mrb[0].mxu0
        %v717 = vadd.f32 0.0, %v716
        %v718 = vpop.f32.mrb[0].mxu0
        %719 = vmatprep.mubr.f32.mxu0 0.0
        %v720 = vand.u32 %v573, 4294901760
        %v721 = vsub.f32 %v573, %v720
        %v722 = vand.u32 %v721, 4294901760
        %v723 = vsub.f32 %v721, %v722
        %v724 = vand.u32 %v723, 4294901760
        %725 = vmatmul.mubr.f32.gmra.mrb[0].mxu0 %v724
        %v726 = vpop.f32.mrb[0].mxu0
        %v727 = vadd.f32 0.0, %v726
        %v728 = vpop.f32.mrb[0].mxu0
        %729 = vmatprep.mubr.f32.mxu0 0.0
        %v730 = vand.u32 %v574, 4294901760
        %v731 = vsub.f32 %v574, %v730
        %v732 = vand.u32 %v731, 4294901760
        %v733 = vsub.f32 %v731, %v732
        %v734 = vand.u32 %v733, 4294901760
        %735 = vmatmul.mubr.f32.gmra.mrb[0].mxu0 %v734
        %v736 = vpop.f32.mrb[0].mxu0
        %v737 = vadd.f32 0.0, %v736
        %v738 = vpop.f32.mrb[0].mxu0
        %739 = vmatprep.mubr.f32.mxu0 0.0
        %v740 = vand.u32 %v575, 4294901760
        %v741 = vsub.f32 %v575, %v740
        %v742 = vand.u32 %v741, 4294901760
        %v743 = vsub.f32 %v741, %v742
        %v744 = vand.u32 %v743, 4294901760
        %745 = vmatmul.mubr.f32.gmra.mrb[0].mxu0 %v744
        %v746 = vpop.f32.mrb[0].mxu0
        %v747 = vadd.f32 0.0, %v746
        %v748 = vpop.f32.mrb[0].mxu0
        %749 = vmatprep.mubr.f32.mxu0 0.0
        %v750 = vand.u32 %v576, 4294901760
        %v751 = vsub.f32 %v576, %v750
        %v752 = vand.u32 %v751, 4294901760
        %v753 = vsub.f32 %v751, %v752
        %v754 = vand.u32 %v753, 4294901760
        %755 = vmatmul.mubr.f32.gmra.mrb[0].mxu0 %v754
        %v756 = vpop.f32.mrb[0].mxu0
        %v757 = vadd.f32 0.0, %v756
        %v758 = vpop.f32.mrb[0].mxu0
        %759 = vmatprep.mubr.f32.mxu0 0.0
        %v760 = vand.u32 %v577, 4294901760
        %v761 = vsub.f32 %v577, %v760
        %v762 = vand.u32 %v761, 4294901760
        %v763 = vsub.f32 %v761, %v762
        %v764 = vand.u32 %v763, 4294901760
        %765 = vmatmul.mubr.f32.gmra.mrb[0].mxu0 %v764
        %v766 = vpop.f32.mrb[0].mxu0
        %v767 = vadd.f32 0.0, %v766
        %v768 = vpop.f32.mrb[0].mxu0
        %769 = vmatprep.mubr.f32.mxu0 0.0
        %v770 = vand.u32 %v578, 4294901760
        %v771 = vsub.f32 %v578, %v770
        %v772 = vand.u32 %v771, 4294901760
        %v773 = vsub.f32 %v771, %v772
        %v774 = vand.u32 %v773, 4294901760
        %775 = vmatmul.mubr.f32.gmra.mrb[0].mxu0 %v774
        %v776 = vpop.f32.mrb[0].mxu0
        %v777 = vadd.f32 0.0, %v776
        %v778 = vpop.f32.mrb[0].mxu0
        %779 = vmatprep.mubr.f32.mxu0 0.0
        %v780 = vand.u32 %v579, 4294901760
        %v781 = vsub.f32 %v579, %v780
        %v782 = vand.u32 %v781, 4294901760
        %v783 = vsub.f32 %v781, %v782
        %v784 = vand.u32 %v783, 4294901760
        %785 = vmatmul.mubr.f32.gmra.mrb[0].mxu0 %v784
        %v786 = vpop.f32.mrb[0].mxu0
        %v787 = vadd.f32 0.0, %v786
        %v788 = vpop.f32.mrb[0].mxu0
        %789 = vmatprep.mubr.f32.mxu0 0.0
        %v790 = vand.u32 %v580, 4294901760
        %v791 = vsub.f32 %v580, %v790
        %v792 = vand.u32 %v791, 4294901760
        %v793 = vsub.f32 %v791, %v792
        %v794 = vand.u32 %v793, 4294901760
        %795 = vmatmul.mubr.f32.gmra.mrb[0].mxu0 %v794
        %v796 = vpop.f32.mrb[0].mxu0
        %v797 = vadd.f32 0.0, %v796
        %v798 = vpop.f32.mrb[0].mxu0
        %799 = vmatprep.mubr.f32.mxu0 0.0
        %v800 = vand.u32 %v581, 4294901760
        %v801 = vsub.f32 %v581, %v800
        %v802 = vand.u32 %v801, 4294901760
        %v803 = vsub.f32 %v801, %v802
        %v804 = vand.u32 %v803, 4294901760
        %805 = vmatmul.mubr.f32.gmra.mrb[0].mxu0 %v804
        %v806 = vpop.f32.mrb[0].mxu0
        %v807 = vadd.f32 0.0, %v806
        %v808 = vpop.f32.mrb[0].mxu0
        %809 = vmatprep.mubr.f32.mxu0 0.0
        %v810 = vand.u32 %v582, 4294901760
        %v811 = vsub.f32 %v582, %v810
        %v812 = vand.u32 %v811, 4294901760
        %v813 = vsub.f32 %v811, %v812
        %v814 = vand.u32 %v813, 4294901760
        %815 = vmatmul.mubr.f32.gmra.mrb[0].mxu0 %v814
        %v816 = vpop.f32.mrb[0].mxu0
        %v817 = vadd.f32 0.0, %v816
        %v818 = vpop.f32.mrb[0].mxu0
        %819 = vmatprep.mubr.f32.mxu0 0.0
        %v820 = vand.u32 %v583, 4294901760
        %v821 = vsub.f32 %v583, %v820
        %v822 = vand.u32 %v821, 4294901760
        %v823 = vsub.f32 %v821, %v822
        %v824 = vand.u32 %v823, 4294901760
        %825 = vmatmul.mubr.f32.gmra.mrb[0].mxu0 %v824
        %v826 = vpop.f32.mrb[0].mxu0
        %v827 = vadd.f32 0.0, %v826
        %v828 = vpop.f32.mrb[0].mxu0
        %829 = vmatprep.mubr.f32.mxu0 0.0
        %v830 = vand.u32 %v584, 4294901760
        %v831 = vsub.f32 %v584, %v830
        %v832 = vand.u32 %v831, 4294901760
        %v833 = vsub.f32 %v831, %v832
        %v834 = vand.u32 %v833, 4294901760
        %835 = vmatmul.mubr.f32.gmra.mrb[0].mxu0 %v834
        %v836 = vpop.f32.mrb[0].mxu0
        %v837 = vadd.f32 0.0, %v836
        %v838 = vpop.f32.mrb[0].mxu0
        %839 = vmatprep.mubr.f32.mxu0 0.0
        %v840 = vand.u32 %v585, 4294901760
        %v841 = vsub.f32 %v585, %v840
        %v842 = vand.u32 %v841, 4294901760
        %v843 = vsub.f32 %v841, %v842
        %v844 = vand.u32 %v843, 4294901760
        %845 = vmatmul.mubr.f32.gmra.mrb[0].mxu0 %v844
        %v846 = vpop.f32.mrb[0].mxu0
        %v847 = vadd.f32 0.0, %v846
        %v848 = vpop.f32.mrb[0].mxu0
        %849 = vmatprep.mubr.f32.mxu0 0.0
        %v850 = vand.u32 %v586, 4294901760
        %v851 = vsub.f32 %v586, %v850
        %v852 = vand.u32 %v851, 4294901760
        %v853 = vsub.f32 %v851, %v852
        %v854 = vand.u32 %v853, 4294901760
        %855 = vmatmul.mubr.f32.gmra.mrb[0].mxu0 %v854
        %v856 = vpop.f32.mrb[0].mxu0
        %v857 = vadd.f32 0.0, %v856
        %v858 = vpop.f32.mrb[0].mxu0
        %859 = vmatprep.mubr.f32.mxu0 0.0
        %v860 = vand.u32 %v587, 4294901760
        %v861 = vsub.f32 %v587, %v860
        %v862 = vand.u32 %v861, 4294901760
        %v863 = vsub.f32 %v861, %v862
        %v864 = vand.u32 %v863, 4294901760
        %865 = vmatmul.mubr.f32.gmra.mrb[0].mxu0 %v864
        %v866 = vpop.f32.mrb[0].mxu0
        %v867 = vadd.f32 0.0, %v866
        %v868 = vpop.f32.mrb[0].mxu0
        %869 = vmatprep.mubr.f32.mxu0 0.0
        %v870 = vand.u32 %v588, 4294901760
        %v871 = vsub.f32 %v588, %v870
        %v872 = vand.u32 %v871, 4294901760
        %v873 = vsub.f32 %v871, %v872
        %v874 = vand.u32 %v873, 4294901760
        %875 = vmatmul.mubr.f32.gmra.mrb[0].mxu0 %v874
        %v876 = vpop.f32.mrb[0].mxu0
        %v877 = vadd.f32 0.0, %v876
        %v878 = vpop.f32.mrb[0].mxu0
        %879 = vmatprep.mubr.f32.mxu0 0.0
        %v880 = vand.u32 %v589, 4294901760
        %v881 = vsub.f32 %v589, %v880
        %v882 = vand.u32 %v881, 4294901760
        %v883 = vsub.f32 %v881, %v882
        %v884 = vand.u32 %v883, 4294901760
        %885 = vmatmul.mubr.f32.gmra.mrb[0].mxu0 %v884
        %v886 = vpop.f32.mrb[0].mxu0
        %v887 = vadd.f32 0.0, %v886
        %v888 = vpop.f32.mrb[0].mxu0
        %889 = vmatprep.mubr.f32.mxu0 0.0
        %v890 = vand.u32 %v590, 4294901760
        %v891 = vsub.f32 %v590, %v890
        %v892 = vand.u32 %v891, 4294901760
        %v893 = vsub.f32 %v891, %v892
        %v894 = vand.u32 %v893, 4294901760
        %895 = vmatmul.mubr.f32.gmra.mrb[0].mxu0 %v894
        %v896 = vpop.f32.mrb[0].mxu0
        %v897 = vadd.f32 0.0, %v896
        %v898 = vpop.f32.mrb[0].mxu0
        %899 = vmatprep.mubr.f32.mxu0 0.0
        %v900 = vand.u32 %v591, 4294901760
        %v901 = vsub.f32 %v591, %v900
        %v902 = vand.u32 %v901, 4294901760
        %v903 = vsub.f32 %v901, %v902
        %v904 = vand.u32 %v903, 4294901760
        %905 = vmatmul.mubr.f32.gmra.mrb[0].mxu0 %v904
        %v906 = vpop.f32.mrb[0].mxu0
        %v907 = vadd.f32 0.0, %v906
        %v908 = vpop.f32.mrb[0].mxu0
        %909 = vmatprep.mubr.f32.mxu0 0.0
        %v910 = vand.u32 %v592, 4294901760
        %v911 = vsub.f32 %v592, %v910
        %v912 = vand.u32 %v911, 4294901760
        %v913 = vsub.f32 %v911, %v912
        %v914 = vand.u32 %v913, 4294901760
        %915 = vmatmul.mubr.f32.gmra.mrb[0].mxu0 %v914
        %v916 = vpop.f32.mrb[0].mxu0
        %v917 = vadd.f32 0.0, %v916
        %v918 = vpop.f32.mrb[0].mxu0
        %919 = vmatprep.mubr.f32.mxu0 0.0
        %v920 = vand.u32 %v593, 4294901760
        %v921 = vsub.f32 %v593, %v920
        %v922 = vand.u32 %v921, 4294901760
        %v923 = vsub.f32 %v921, %v922
        %v924 = vand.u32 %v923, 4294901760
        %925 = vmatmul.mubr.f32.gmra.mrb[0].mxu0 %v924
        %v926 = vpop.f32.mrb[0].mxu0
        %v927 = vadd.f32 0.0, %v926
        %v928 = vpop.f32.mrb[0].mxu0
        %929 = vmatprep.mubr.f32.mxu0 0.0
        %v930 = vand.u32 %v594, 4294901760
        %v931 = vsub.f32 %v594, %v930
        %v932 = vand.u32 %v931, 4294901760
        %v933 = vsub.f32 %v931, %v932
        %v934 = vand.u32 %v933, 4294901760
        %935 = vmatmul.mubr.f32.gmra.mrb[0].mxu0 %v934
        %v936 = vpop.f32.mrb[0].mxu0
        %v937 = vadd.f32 0.0, %v936
        %v938 = vpop.f32.mrb[0].mxu0
        %939 = vmatprep.mubr.f32.mxu0 0.0
        %v940 = vand.u32 %v595, 4294901760
        %v941 = vsub.f32 %v595, %v940
        %v942 = vand.u32 %v941, 4294901760
        %v943 = vsub.f32 %v941, %v942
        %v944 = vand.u32 %v943, 4294901760
        %945 = vmatmul.mubr.f32.gmra.mrb[0].mxu0 %v944
        %v946 = vpop.f32.mrb[0].mxu0
        %v947 = vadd.f32 0.0, %v946
        %v948 = vpop.f32.mrb[0].mxu0
        %949 = vmatprep.mubr.f32.mxu0 0.0
        %v950 = vand.u32 %v596, 4294901760
        %v951 = vsub.f32 %v596, %v950
        %v952 = vand.u32 %v951, 4294901760
        %v953 = vsub.f32 %v951, %v952
        %v954 = vand.u32 %v953, 4294901760
        %955 = vmatmul.mubr.f32.gmra.mrb[0].mxu0 %v954
        %v956 = vpop.f32.mrb[0].mxu0
        %v957 = vadd.f32 0.0, %v956
        %v958 = vpop.f32.mrb[0].mxu0
        %959 = vmatprep.mubr.f32.mxu0 0.0
        %v960 = vand.u32 %v597, 4294901760
        %v961 = vsub.f32 %v597, %v960
        %v962 = vand.u32 %v961, 4294901760
        %v963 = vsub.f32 %v961, %v962
        %v964 = vand.u32 %v963, 4294901760
        %965 = vmatmul.mubr.f32.gmra.mrb[0].mxu0 %v964
        %v966 = vpop.f32.mrb[0].mxu0
        %v967 = vadd.f32 0.0, %v966
        %v968 = vpop.f32.mrb[0].mxu0
        %969 = vmatprep.mubr.f32.mxu0 0.0
        %v970 = vand.u32 %v598, 4294901760
        %v971 = vsub.f32 %v598, %v970
        %v972 = vand.u32 %v971, 4294901760
        %v973 = vsub.f32 %v971, %v972
        %v974 = vand.u32 %v973, 4294901760
        %975 = vmatmul.mubr.f32.gmra.mrb[0].mxu0 %v974
        %v976 = vpop.f32.mrb[0].mxu0
        %v977 = vadd.f32 0.0, %v976
        %v978 = vpop.f32.mrb[0].mxu0
        %979 = vmatprep.mubr.f32.mxu0 0.0
        %v980 = vand.u32 %v599, 4294901760
        %v981 = vsub.f32 %v599, %v980
        %v982 = vand.u32 %v981, 4294901760
        %v983 = vsub.f32 %v981, %v982
        %v984 = vand.u32 %v983, 4294901760
        %985 = vmatmul.mubr.f32.gmra.mrb[0].mxu0 %v984
        %v986 = vpop.f32.mrb[0].mxu0
        %v987 = vadd.f32 0.0, %v986
        %v988 = vpop.f32.mrb[0].mxu0
        %989 = vmatprep.mubr.f32.mxu0 0.0
        %v990 = vand.u32 %v600, 4294901760
        %v991 = vsub.f32 %v600, %v990
        %v992 = vand.u32 %v991, 4294901760
        %v993 = vsub.f32 %v991, %v992
        %v994 = vand.u32 %v993, 4294901760
        %995 = vmatmul.mubr.f32.gmra.mrb[0].mxu0 %v994
        %v996 = vpop.f32.mrb[0].mxu0
        %v997 = vadd.f32 0.0, %v996
        %v998 = vpop.f32.mrb[0].mxu0
        %999 = vmatprep.mubr.f32.mxu0 0.0
        %v1000 = vand.u32 %v601, 4294901760
        %v1001 = vsub.f32 %v601, %v1000
        %v1002 = vand.u32 %v1001, 4294901760
        %v1003 = vsub.f32 %v1001, %v1002
        %v1004 = vand.u32 %v1003, 4294901760
        %1005 = vmatmul.mubr.f32.gmra.mrb[0].mxu0 %v1004
        %v1006 = vpop.f32.mrb[0].mxu0
        %v1007 = vadd.f32 0.0, %v1006
        %v1008 = vpop.f32.mrb[0].mxu0
        %1009 = vmatprep.mubr.f32.mxu0 0.0
        %v1010 = vand.u32 %v602, 4294901760
        %v1011 = vsub.f32 %v602, %v1010
        %v1012 = vand.u32 %v1011, 4294901760
        %v1013 = vsub.f32 %v1011, %v1012
        %v1014 = vand.u32 %v1013, 4294901760
        %1015 = vmatmul.mubr.f32.gmra.mrb[0].mxu0 %v1014
        %v1016 = vpop.f32.mrb[0].mxu0
        %v1017 = vadd.f32 0.0, %v1016
        %v1018 = vpop.f32.mrb[0].mxu0
        %1019 = vdwg.mxu0
        %1020 = vmatprep.subr.mxu0 0.0
        %v1021 = vand.u32 %v603, 4294901760
        %v1022 = vsub.f32 %v603, %v1021
        %v1023 = vand.u32 %v1022, 4294901760
        %v1024 = vsub.f32 %v1022, %v1023
        %v1025 = vand.u32 %v1024, 4294901760
        %1026 = vmatpush1.msra.mxu0 %v1025
        %1027 = vmatprep.subr.mxu0 0.0
        %v1028 = vand.u32 %v604, 4294901760
        %v1029 = vsub.f32 %v604, %v1028
        %v1030 = vand.u32 %v1029, 4294901760
        %v1031 = vsub.f32 %v1029, %v1030
        %v1032 = vand.u32 %v1031, 4294901760
        %1033 = vmatpush1.msra.mxu0 %v1032
        %1034 = vmatprep.subr.mxu0 0.0
        %v1035 = vand.u32 %v605, 4294901760
        %v1036 = vsub.f32 %v605, %v1035
        %v1037 = vand.u32 %v1036, 4294901760
        %v1038 = vsub.f32 %v1036, %v1037
        %v1039 = vand.u32 %v1038, 4294901760
        %1040 = vmatpush1.msra.mxu0 %v1039
        %1041 = vmatprep.subr.mxu0 0.0
        %v1042 = vand.u32 %v606, 4294901760
        %v1043 = vsub.f32 %v606, %v1042
        %v1044 = vand.u32 %v1043, 4294901760
        %v1045 = vsub.f32 %v1043, %v1044
        %v1046 = vand.u32 %v1045, 4294901760
        %1047 = vmatpush1.msra.mxu0 %v1046
        %1048 = vmatprep.subr.mxu0 0.0
        %v1049 = vand.u32 %v607, 4294901760
        %v1050 = vsub.f32 %v607, %v1049
        %v1051 = vand.u32 %v1050, 4294901760
        %v1052 = vsub.f32 %v1050, %v1051
        %v1053 = vand.u32 %v1052, 4294901760
        %1054 = vmatpush1.msra.mxu0 %v1053
        %1055 = vmatprep.subr.mxu0 0.0
        %v1056 = vand.u32 %v608, 4294901760
        %v1057 = vsub.f32 %v608, %v1056
        %v1058 = vand.u32 %v1057, 4294901760
        %v1059 = vsub.f32 %v1057, %v1058
        %v1060 = vand.u32 %v1059, 4294901760
        %1061 = vmatpush1.msra.mxu0 %v1060
        %1062 = vmatprep.subr.mxu0 0.0
        %v1063 = vand.u32 %v609, 4294901760
        %v1064 = vsub.f32 %v609, %v1063
        %v1065 = vand.u32 %v1064, 4294901760
        %v1066 = vsub.f32 %v1064, %v1065
        %v1067 = vand.u32 %v1066, 4294901760
        %1068 = vmatpush1.msra.mxu0 %v1067
        %1069 = vmatprep.subr.mxu0 0.0
        %v1070 = vand.u32 %v610, 4294901760
        %v1071 = vsub.f32 %v610, %v1070
        %v1072 = vand.u32 %v1071, 4294901760
        %v1073 = vsub.f32 %v1071, %v1072
        %v1074 = vand.u32 %v1073, 4294901760
        %1075 = vmatpush1.msra.mxu0 %v1074
        %1076 = vmatprep.subr.mxu0 0.0
        %v1077 = vand.u32 %v611, 4294901760
        %v1078 = vsub.f32 %v611, %v1077
        %v1079 = vand.u32 %v1078, 4294901760
        %v1080 = vsub.f32 %v1078, %v1079
        %v1081 = vand.u32 %v1080, 4294901760
        %1082 = vmatpush1.msra.mxu0 %v1081
        %1083 = vmatprep.subr.mxu0 0.0
        %v1084 = vand.u32 %v612, 4294901760
        %v1085 = vsub.f32 %v612, %v1084
        %v1086 = vand.u32 %v1085, 4294901760
        %v1087 = vsub.f32 %v1085, %v1086
        %v1088 = vand.u32 %v1087, 4294901760
        %1089 = vmatpush1.msra.mxu0 %v1088
        %1090 = vmatprep.subr.mxu0 0.0
        %v1091 = vand.u32 %v613, 4294901760
        %v1092 = vsub.f32 %v613, %v1091
        %v1093 = vand.u32 %v1092, 4294901760
        %v1094 = vsub.f32 %v1092, %v1093
        %v1095 = vand.u32 %v1094, 4294901760
        %1096 = vmatpush1.msra.mxu0 %v1095
        %1097 = vmatprep.subr.mxu0 0.0
        %v1098 = vand.u32 %v614, 4294901760
        %v1099 = vsub.f32 %v614, %v1098
        %v1100 = vand.u32 %v1099, 4294901760
        %v1101 = vsub.f32 %v1099, %v1100
        %v1102 = vand.u32 %v1101, 4294901760
        %1103 = vmatpush1.msra.mxu0 %v1102
        %1104 = vmatprep.subr.mxu0 0.0
        %v1105 = vand.u32 %v615, 4294901760
        %v1106 = vsub.f32 %v615, %v1105
        %v1107 = vand.u32 %v1106, 4294901760
        %v1108 = vsub.f32 %v1106, %v1107
        %v1109 = vand.u32 %v1108, 4294901760
        %1110 = vmatpush1.msra.mxu0 %v1109
        %1111 = vmatprep.subr.mxu0 0.0
        %v1112 = vand.u32 %v616, 4294901760
        %v1113 = vsub.f32 %v616, %v1112
        %v1114 = vand.u32 %v1113, 4294901760
        %v1115 = vsub.f32 %v1113, %v1114
        %v1116 = vand.u32 %v1115, 4294901760
        %1117 = vmatpush1.msra.mxu0 %v1116
        %1118 = vmatprep.subr.mxu0 0.0
        %v1119 = vand.u32 %v617, 4294901760
        %v1120 = vsub.f32 %v617, %v1119
        %v1121 = vand.u32 %v1120, 4294901760
        %v1122 = vsub.f32 %v1120, %v1121
        %v1123 = vand.u32 %v1122, 4294901760
        %1124 = vmatpush1.msra.mxu0 %v1123
        %1125 = vmatprep.subr.mxu0 0.0
        %v1126 = vand.u32 %v618, 4294901760
        %v1127 = vsub.f32 %v618, %v1126
        %v1128 = vand.u32 %v1127, 4294901760
        %v1129 = vsub.f32 %v1127, %v1128
        %v1130 = vand.u32 %v1129, 4294901760
        %1131 = vmatpush1.msra.mxu0 %v1130
        %1132 = vmatprep.subr.mxu0 0.0
        %1133 = vmatpush1.msra.mxu0 0.0
        %1134 = vmatprep.subr.mxu0 0.0
        %1135 = vmatpush1.msra.mxu0 0.0
        %1136 = vmatprep.subr.mxu0 0.0
        %1137 = vmatpush1.msra.mxu0 0.0
        %1138 = vmatprep.subr.mxu0 0.0
        %1139 = vmatpush1.msra.mxu0 0.0
        %1140 = vmatprep.subr.mxu0 0.0
        %1141 = vmatpush1.msra.mxu0 0.0
        %1142 = vmatprep.subr.mxu0 0.0
        %1143 = vmatpush1.msra.mxu0 0.0
        %1144 = vmatprep.subr.mxu0 0.0
        %1145 = vmatpush1.msra.mxu0 0.0
        %1146 = vmatprep.subr.mxu0 0.0
        %1147 = vmatpush1.msra.mxu0 0.0
        %1148 = vmatprep.subr.mxu0 0.0
        %1149 = vmatpush1.msra.mxu0 0.0
        %1150 = vmatprep.subr.mxu0 0.0
        %1151 = vmatpush1.msra.mxu0 0.0
        %1152 = vmatprep.subr.mxu0 0.0
        %1153 = vmatpush1.msra.mxu0 0.0
        %1154 = vmatprep.subr.mxu0 0.0
        %1155 = vmatpush1.msra.mxu0 0.0
        %1156 = vmatprep.subr.mxu0 0.0
        %1157 = vmatpush1.msra.mxu0 0.0
        %1158 = vmatprep.subr.mxu0 0.0
        %1159 = vmatpush1.msra.mxu0 0.0
        %1160 = vmatprep.subr.mxu0 0.0
        %1161 = vmatpush1.msra.mxu0 0.0
        %1162 = vmatprep.subr.mxu0 0.0
        %1163 = vmatpush1.msra.mxu0 0.0
        %1164 = vmatprep.mubr.f32.mxu0 0.0
        %v1165 = vand.u32 %v571, 4294901760
        %1166 = vmatmul.mubr.f32.gmra.mrb[0].mxu0 %v1165
        %v1167 = vpop.f32.mrb[0].mxu0
        %v1168 = vadd.f32 %v707, %v1167
        %v1169 = vpop.f32.mrb[0].mxu0
        %1170 = vmatprep.mubr.f32.mxu0 0.0
        %v1171 = vand.u32 %v572, 4294901760
        %1172 = vmatmul.mubr.f32.gmra.mrb[0].mxu0 %v1171
        %v1173 = vpop.f32.mrb[0].mxu0
        %v1174 = vadd.f32 %v717, %v1173
        %v1175 = vpop.f32.mrb[0].mxu0
        %1176 = vmatprep.mubr.f32.mxu0 0.0
        %v1177 = vand.u32 %v573, 4294901760
        %1178 = vmatmul.mubr.f32.gmra.mrb[0].mxu0 %v1177
        %v1179 = vpop.f32.mrb[0].mxu0
        %v1180 = vadd.f32 %v727, %v1179
        %v1181 = vpop.f32.mrb[0].mxu0
        %1182 = vmatprep.mubr.f32.mxu0 0.0
        %v1183 = vand.u32 %v574, 4294901760
        %1184 = vmatmul.mubr.f32.gmra.mrb[0].mxu0 %v1183
        %v1185 = vpop.f32.mrb[0].mxu0
        %v1186 = vadd.f32 %v737, %v1185
        %v1187 = vpop.f32.mrb[0].mxu0
        %1188 = vmatprep.mubr.f32.mxu0 0.0
        %v1189 = vand.u32 %v575, 4294901760
        %1190 = vmatmul.mubr.f32.gmra.mrb[0].mxu0 %v1189
        %v1191 = vpop.f32.mrb[0].mxu0
        %v1192 = vadd.f32 %v747, %v1191
        %v1193 = vpop.f32.mrb[0].mxu0
        %1194 = vmatprep.mubr.f32.mxu0 0.0
        %v1195 = vand.u32 %v576, 4294901760
        %1196 = vmatmul.mubr.f32.gmra.mrb[0].mxu0 %v1195
        %v1197 = vpop.f32.mrb[0].mxu0
        %v1198 = vadd.f32 %v757, %v1197
        %v1199 = vpop.f32.mrb[0].mxu0
        %1200 = vmatprep.mubr.f32.mxu0 0.0
        %v1201 = vand.u32 %v577, 4294901760
        %1202 = vmatmul.mubr.f32.gmra.mrb[0].mxu0 %v1201
        %v1203 = vpop.f32.mrb[0].mxu0
        %v1204 = vadd.f32 %v767, %v1203
        %v1205 = vpop.f32.mrb[0].mxu0
        %1206 = vmatprep.mubr.f32.mxu0 0.0
        %v1207 = vand.u32 %v578, 4294901760
        %1208 = vmatmul.mubr.f32.gmra.mrb[0].mxu0 %v1207
        %v1209 = vpop.f32.mrb[0].mxu0
        %v1210 = vadd.f32 %v777, %v1209
        %v1211 = vpop.f32.mrb[0].mxu0
        %1212 = vmatprep.mubr.f32.mxu0 0.0
        %v1213 = vand.u32 %v579, 4294901760
        %1214 = vmatmul.mubr.f32.gmra.mrb[0].mxu0 %v1213
        %v1215 = vpop.f32.mrb[0].mxu0
        %v1216 = vadd.f32 %v787, %v1215
        %v1217 = vpop.f32.mrb[0].mxu0
        %1218 = vmatprep.mubr.f32.mxu0 0.0
        %v1219 = vand.u32 %v580, 4294901760
        %1220 = vmatmul.mubr.f32.gmra.mrb[0].mxu0 %v1219
        %v1221 = vpop.f32.mrb[0].mxu0
        %v1222 = vadd.f32 %v797, %v1221
        %v1223 = vpop.f32.mrb[0].mxu0
        %1224 = vmatprep.mubr.f32.mxu0 0.0
        %v1225 = vand.u32 %v581, 4294901760
        %1226 = vmatmul.mubr.f32.gmra.mrb[0].mxu0 %v1225
        %v1227 = vpop.f32.mrb[0].mxu0
        %v1228 = vadd.f32 %v807, %v1227
        %v1229 = vpop.f32.mrb[0].mxu0
        %1230 = vmatprep.mubr.f32.mxu0 0.0
        %v1231 = vand.u32 %v582, 4294901760
        %1232 = vmatmul.mubr.f32.gmra.mrb[0].mxu0 %v1231
        %v1233 = vpop.f32.mrb[0].mxu0
        %v1234 = vadd.f32 %v817, %v1233
        %v1235 = vpop.f32.mrb[0].mxu0
        %1236 = vmatprep.mubr.f32.mxu0 0.0
        %v1237 = vand.u32 %v583, 4294901760
        %1238 = vmatmul.mubr.f32.gmra.mrb[0].mxu0 %v1237
        %v1239 = vpop.f32.mrb[0].mxu0
        %v1240 = vadd.f32 %v827, %v1239
        %v1241 = vpop.f32.mrb[0].mxu0
        %1242 = vmatprep.mubr.f32.mxu0 0.0
        %v1243 = vand.u32 %v584, 4294901760
        %1244 = vmatmul.mubr.f32.gmra.mrb[0].mxu0 %v1243
        %v1245 = vpop.f32.mrb[0].mxu0
        %v1246 = vadd.f32 %v837, %v1245
        %v1247 = vpop.f32.mrb[0].mxu0
        %1248 = vmatprep.mubr.f32.mxu0 0.0
        %v1249 = vand.u32 %v585, 4294901760
        %1250 = vmatmul.mubr.f32.gmra.mrb[0].mxu0 %v1249
        %v1251 = vpop.f32.mrb[0].mxu0
        %v1252 = vadd.f32 %v847, %v1251
        %v1253 = vpop.f32.mrb[0].mxu0
        %1254 = vmatprep.mubr.f32.mxu0 0.0
        %v1255 = vand.u32 %v586, 4294901760
        %1256 = vmatmul.mubr.f32.gmra.mrb[0].mxu0 %v1255
        %v1257 = vpop.f32.mrb[0].mxu0
        %v1258 = vadd.f32 %v857, %v1257
        %v1259 = vpop.f32.mrb[0].mxu0
        %1260 = vmatprep.mubr.f32.mxu0 0.0
        %v1261 = vand.u32 %v587, 4294901760
        %1262 = vmatmul.mubr.f32.gmra.mrb[0].mxu0 %v1261
        %v1263 = vpop.f32.mrb[0].mxu0
        %v1264 = vadd.f32 %v867, %v1263
        %v1265 = vpop.f32.mrb[0].mxu0
        %1266 = vmatprep.mubr.f32.mxu0 0.0
        %v1267 = vand.u32 %v588, 4294901760
        %1268 = vmatmul.mubr.f32.gmra.mrb[0].mxu0 %v1267
        %v1269 = vpop.f32.mrb[0].mxu0
        %v1270 = vadd.f32 %v877, %v1269
        %v1271 = vpop.f32.mrb[0].mxu0
        %1272 = vmatprep.mubr.f32.mxu0 0.0
        %v1273 = vand.u32 %v589, 4294901760
        %1274 = vmatmul.mubr.f32.gmra.mrb[0].mxu0 %v1273
        %v1275 = vpop.f32.mrb[0].mxu0
        %v1276 = vadd.f32 %v887, %v1275
        %v1277 = vpop.f32.mrb[0].mxu0
        %1278 = vmatprep.mubr.f32.mxu0 0.0
        %v1279 = vand.u32 %v590, 4294901760
        %1280 = vmatmul.mubr.f32.gmra.mrb[0].mxu0 %v1279
        %v1281 = vpop.f32.mrb[0].mxu0
        %v1282 = vadd.f32 %v897, %v1281
        %v1283 = vpop.f32.mrb[0].mxu0
        %1284 = vmatprep.mubr.f32.mxu0 0.0
        %v1285 = vand.u32 %v591, 4294901760
        %1286 = vmatmul.mubr.f32.gmra.mrb[0].mxu0 %v1285
        %v1287 = vpop.f32.mrb[0].mxu0
        %v1288 = vadd.f32 %v907, %v1287
        %v1289 = vpop.f32.mrb[0].mxu0
        %1290 = vmatprep.mubr.f32.mxu0 0.0
        %v1291 = vand.u32 %v592, 4294901760
        %1292 = vmatmul.mubr.f32.gmra.mrb[0].mxu0 %v1291
        %v1293 = vpop.f32.mrb[0].mxu0
        %v1294 = vadd.f32 %v917, %v1293
        %v1295 = vpop.f32.mrb[0].mxu0
        %1296 = vmatprep.mubr.f32.mxu0 0.0
        %v1297 = vand.u32 %v593, 4294901760
        %1298 = vmatmul.mubr.f32.gmra.mrb[0].mxu0 %v1297
        %v1299 = vpop.f32.mrb[0].mxu0
        %v1300 = vadd.f32 %v927, %v1299
        %v1301 = vpop.f32.mrb[0].mxu0
        %1302 = vmatprep.mubr.f32.mxu0 0.0
        %v1303 = vand.u32 %v594, 4294901760
        %1304 = vmatmul.mubr.f32.gmra.mrb[0].mxu0 %v1303
        %v1305 = vpop.f32.mrb[0].mxu0
        %v1306 = vadd.f32 %v937, %v1305
        %v1307 = vpop.f32.mrb[0].mxu0
        %1308 = vmatprep.mubr.f32.mxu0 0.0
        %v1309 = vand.u32 %v595, 4294901760
        %1310 = vmatmul.mubr.f32.gmra.mrb[0].mxu0 %v1309
        %v1311 = vpop.f32.mrb[0].mxu0
        %v1312 = vadd.f32 %v947, %v1311
        %v1313 = vpop.f32.mrb[0].mxu0
        %1314 = vmatprep.mubr.f32.mxu0 0.0
        %v1315 = vand.u32 %v596, 4294901760
        %1316 = vmatmul.mubr.f32.gmra.mrb[0].mxu0 %v1315
        %v1317 = vpop.f32.mrb[0].mxu0
        %v1318 = vadd.f32 %v957, %v1317
        %v1319 = vpop.f32.mrb[0].mxu0
        %1320 = vmatprep.mubr.f32.mxu0 0.0
        %v1321 = vand.u32 %v597, 4294901760
        %1322 = vmatmul.mubr.f32.gmra.mrb[0].mxu0 %v1321
        %v1323 = vpop.f32.mrb[0].mxu0
        %v1324 = vadd.f32 %v967, %v1323
        %v1325 = vpop.f32.mrb[0].mxu0
        %1326 = vmatprep.mubr.f32.mxu0 0.0
        %v1327 = vand.u32 %v598, 4294901760
        %1328 = vmatmul.mubr.f32.gmra.mrb[0].mxu0 %v1327
        %v1329 = vpop.f32.mrb[0].mxu0
        %v1330 = vadd.f32 %v977, %v1329
        %v1331 = vpop.f32.mrb[0].mxu0
        %1332 = vmatprep.mubr.f32.mxu0 0.0
        %v1333 = vand.u32 %v599, 4294901760
        %1334 = vmatmul.mubr.f32.gmra.mrb[0].mxu0 %v1333
        %v1335 = vpop.f32.mrb[0].mxu0
        %v1336 = vadd.f32 %v987, %v1335
        %v1337 = vpop.f32.mrb[0].mxu0
        %1338 = vmatprep.mubr.f32.mxu0 0.0
        %v1339 = vand.u32 %v600, 4294901760
        %1340 = vmatmul.mubr.f32.gmra.mrb[0].mxu0 %v1339
        %v1341 = vpop.f32.mrb[0].mxu0
        %v1342 = vadd.f32 %v997, %v1341
        %v1343 = vpop.f32.mrb[0].mxu0
        %1344 = vmatprep.mubr.f32.mxu0 0.0
        %v1345 = vand.u32 %v601, 4294901760
        %1346 = vmatmul.mubr.f32.gmra.mrb[0].mxu0 %v1345
        %v1347 = vpop.f32.mrb[0].mxu0
        %v1348 = vadd.f32 %v1007, %v1347
        %v1349 = vpop.f32.mrb[0].mxu0
        %1350 = vmatprep.mubr.f32.mxu0 0.0
        %v1351 = vand.u32 %v602, 4294901760
        %1352 = vmatmul.mubr.f32.gmra.mrb[0].mxu0 %v1351
        %v1353 = vpop.f32.mrb[0].mxu0
        %v1354 = vadd.f32 %v1017, %v1353
        %v1355 = vpop.f32.mrb[0].mxu0
        %1356 = vdwg.mxu0
        %1357 = vmatprep.subr.mxu0 0.0
        %v1358 = vand.u32 %v603, 4294901760
        %v1359 = vsub.f32 %v603, %v1358
        %1360 = vmatpush1.msra.mxu0 %v1359
        %1361 = vmatprep.subr.mxu0 0.0
        %v1362 = vand.u32 %v604, 4294901760
        %v1363 = vsub.f32 %v604, %v1362
        %1364 = vmatpush1.msra.mxu0 %v1363
        %1365 = vmatprep.subr.mxu0 0.0
        %v1366 = vand.u32 %v605, 4294901760
        %v1367 = vsub.f32 %v605, %v1366
        %1368 = vmatpush1.msra.mxu0 %v1367
        %1369 = vmatprep.subr.mxu0 0.0
        %v1370 = vand.u32 %v606, 4294901760
        %v1371 = vsub.f32 %v606, %v1370
        %1372 = vmatpush1.msra.mxu0 %v1371
        %1373 = vmatprep.subr.mxu0 0.0
        %v1374 = vand.u32 %v607, 4294901760
        %v1375 = vsub.f32 %v607, %v1374
        %1376 = vmatpush1.msra.mxu0 %v1375
        %1377 = vmatprep.subr.mxu0 0.0
        %v1378 = vand.u32 %v608, 4294901760
        %v1379 = vsub.f32 %v608, %v1378
        %1380 = vmatpush1.msra.mxu0 %v1379
        %1381 = vmatprep.subr.mxu0 0.0
        %v1382 = vand.u32 %v609, 4294901760
        %v1383 = vsub.f32 %v609, %v1382
        %1384 = vmatpush1.msra.mxu0 %v1383
        %1385 = vmatprep.subr.mxu0 0.0
        %v1386 = vand.u32 %v610, 4294901760
        %v1387 = vsub.f32 %v610, %v1386
        %1388 = vmatpush1.msra.mxu0 %v1387
        %1389 = vmatprep.subr.mxu0 0.0
        %v1390 = vand.u32 %v611, 4294901760
        %v1391 = vsub.f32 %v611, %v1390
        %1392 = vmatpush1.msra.mxu0 %v1391
        %1393 = vmatprep.subr.mxu0 0.0
        %v1394 = vand.u32 %v612, 4294901760
        %v1395 = vsub.f32 %v612, %v1394
        %1396 = vmatpush1.msra.mxu0 %v1395
        %1397 = vmatprep.subr.mxu0 0.0
        %v1398 = vand.u32 %v613, 4294901760
        %v1399 = vsub.f32 %v613, %v1398
        %1400 = vmatpush1.msra.mxu0 %v1399
        %1401 = vmatprep.subr.mxu0 0.0
        %v1402 = vand.u32 %v614, 4294901760
        %v1403 = vsub.f32 %v614, %v1402
        %1404 = vmatpush1.msra.mxu0 %v1403
        %1405 = vmatprep.subr.mxu0 0.0
        %v1406 = vand.u32 %v615, 4294901760
        %v1407 = vsub.f32 %v615, %v1406
        %1408 = vmatpush1.msra.mxu0 %v1407
        %1409 = vmatprep.subr.mxu0 0.0
        %v1410 = vand.u32 %v616, 4294901760
        %v1411 = vsub.f32 %v616, %v1410
        %1412 = vmatpush1.msra.mxu0 %v1411
        %1413 = vmatprep.subr.mxu0 0.0
        %v1414 = vand.u32 %v617, 4294901760
        %v1415 = vsub.f32 %v617, %v1414
        %1416 = vmatpush1.msra.mxu0 %v1415
        %1417 = vmatprep.subr.mxu0 0.0
        %v1418 = vand.u32 %v618, 4294901760
        %v1419 = vsub.f32 %v618, %v1418
        %1420 = vmatpush1.msra.mxu0 %v1419
        %1421 = vmatprep.subr.mxu0 0.0
        %1422 = vmatpush1.msra.mxu0 0.0
        %1423 = vmatprep.subr.mxu0 0.0
        %1424 = vmatpush1.msra.mxu0 0.0
        %1425 = vmatprep.subr.mxu0 0.0
        %1426 = vmatpush1.msra.mxu0 0.0
        %1427 = vmatprep.subr.mxu0 0.0
        %1428 = vmatpush1.msra.mxu0 0.0
        %1429 = vmatprep.subr.mxu0 0.0
        %1430 = vmatpush1.msra.mxu0 0.0
        %1431 = vmatprep.subr.mxu0 0.0
        %1432 = vmatpush1.msra.mxu0 0.0
        %1433 = vmatprep.subr.mxu0 0.0
        %1434 = vmatpush1.msra.mxu0 0.0
        %1435 = vmatprep.subr.mxu0 0.0
        %1436 = vmatpush1.msra.mxu0 0.0
        %1437 = vmatprep.subr.mxu0 0.0
        %1438 = vmatpush1.msra.mxu0 0.0
        %1439 = vmatprep.subr.mxu0 0.0
        %1440 = vmatpush1.msra.mxu0 0.0
        %1441 = vmatprep.subr.mxu0 0.0
        %1442 = vmatpush1.msra.mxu0 0.0
        %1443 = vmatprep.subr.mxu0 0.0
        %1444 = vmatpush1.msra.mxu0 0.0
        %1445 = vmatprep.subr.mxu0 0.0
        %1446 = vmatpush1.msra.mxu0 0.0
        %1447 = vmatprep.subr.mxu0 0.0
        %1448 = vmatpush1.msra.mxu0 0.0
        %1449 = vmatprep.subr.mxu0 0.0
        %1450 = vmatpush1.msra.mxu0 0.0
        %1451 = vmatprep.subr.mxu0 0.0
        %1452 = vmatpush1.msra.mxu0 0.0
        %1453 = vmatprep.mubr.f32.mxu0 0.0
        %v1454 = vand.u32 %v571, 4294901760
        %v1455 = vsub.f32 %v571, %v1454
        %1456 = vmatmul.mubr.f32.gmra.mrb[0].mxu0 %v1455
        %v1457 = vpop.f32.mrb[0].mxu0
        %v1458 = vadd.f32 %v1168, %v1457
        %v1459 = vpop.f32.mrb[0].mxu0
        %1460 = vmatprep.mubr.f32.mxu0 0.0
        %v1461 = vand.u32 %v572, 4294901760
        %v1462 = vsub.f32 %v572, %v1461
        %1463 = vmatmul.mubr.f32.gmra.mrb[0].mxu0 %v1462
        %v1464 = vpop.f32.mrb[0].mxu0
        %v1465 = vadd.f32 %v1174, %v1464
        %v1466 = vpop.f32.mrb[0].mxu0
        %1467 = vmatprep.mubr.f32.mxu0 0.0
        %v1468 = vand.u32 %v573, 4294901760
        %v1469 = vsub.f32 %v573, %v1468
        %1470 = vmatmul.mubr.f32.gmra.mrb[0].mxu0 %v1469
        %v1471 = vpop.f32.mrb[0].mxu0
        %v1472 = vadd.f32 %v1180, %v1471
        %v1473 = vpop.f32.mrb[0].mxu0
        %1474 = vmatprep.mubr.f32.mxu0 0.0
        %v1475 = vand.u32 %v574, 4294901760
        %v1476 = vsub.f32 %v574, %v1475
        %1477 = vmatmul.mubr.f32.gmra.mrb[0].mxu0 %v1476
        %v1478 = vpop.f32.mrb[0].mxu0
        %v1479 = vadd.f32 %v1186, %v1478
        %v1480 = vpop.f32.mrb[0].mxu0
        %1481 = vmatprep.mubr.f32.mxu0 0.0
        %v1482 = vand.u32 %v575, 4294901760
        %v1483 = vsub.f32 %v575, %v1482
        %1484 = vmatmul.mubr.f32.gmra.mrb[0].mxu0 %v1483
        %v1485 = vpop.f32.mrb[0].mxu0
        %v1486 = vadd.f32 %v1192, %v1485
        %v1487 = vpop.f32.mrb[0].mxu0
        %1488 = vmatprep.mubr.f32.mxu0 0.0
        %v1489 = vand.u32 %v576, 4294901760
        %v1490 = vsub.f32 %v576, %v1489
        %1491 = vmatmul.mubr.f32.gmra.mrb[0].mxu0 %v1490
        %v1492 = vpop.f32.mrb[0].mxu0
        %v1493 = vadd.f32 %v1198, %v1492
        %v1494 = vpop.f32.mrb[0].mxu0
        %1495 = vmatprep.mubr.f32.mxu0 0.0
        %v1496 = vand.u32 %v577, 4294901760
        %v1497 = vsub.f32 %v577, %v1496
        %1498 = vmatmul.mubr.f32.gmra.mrb[0].mxu0 %v1497
        %v1499 = vpop.f32.mrb[0].mxu0
        %v1500 = vadd.f32 %v1204, %v1499
        %v1501 = vpop.f32.mrb[0].mxu0
        %1502 = vmatprep.mubr.f32.mxu0 0.0
        %v1503 = vand.u32 %v578, 4294901760
        %v1504 = vsub.f32 %v578, %v1503
        %1505 = vmatmul.mubr.f32.gmra.mrb[0].mxu0 %v1504
        %v1506 = vpop.f32.mrb[0].mxu0
        %v1507 = vadd.f32 %v1210, %v1506
        %v1508 = vpop.f32.mrb[0].mxu0
        %1509 = vmatprep.mubr.f32.mxu0 0.0
        %v1510 = vand.u32 %v579, 4294901760
        %v1511 = vsub.f32 %v579, %v1510
        %1512 = vmatmul.mubr.f32.gmra.mrb[0].mxu0 %v1511
        %v1513 = vpop.f32.mrb[0].mxu0
        %v1514 = vadd.f32 %v1216, %v1513
        %v1515 = vpop.f32.mrb[0].mxu0
        %1516 = vmatprep.mubr.f32.mxu0 0.0
        %v1517 = vand.u32 %v580, 4294901760
        %v1518 = vsub.f32 %v580, %v1517
        %1519 = vmatmul.mubr.f32.gmra.mrb[0].mxu0 %v1518
        %v1520 = vpop.f32.mrb[0].mxu0
        %v1521 = vadd.f32 %v1222, %v1520
        %v1522 = vpop.f32.mrb[0].mxu0
        %1523 = vmatprep.mubr.f32.mxu0 0.0
        %v1524 = vand.u32 %v581, 4294901760
        %v1525 = vsub.f32 %v581, %v1524
        %1526 = vmatmul.mubr.f32.gmra.mrb[0].mxu0 %v1525
        %v1527 = vpop.f32.mrb[0].mxu0
        %v1528 = vadd.f32 %v1228, %v1527
        %v1529 = vpop.f32.mrb[0].mxu0
        %1530 = vmatprep.mubr.f32.mxu0 0.0
        %v1531 = vand.u32 %v582, 4294901760
        %v1532 = vsub.f32 %v582, %v1531
        %1533 = vmatmul.mubr.f32.gmra.mrb[0].mxu0 %v1532
        %v1534 = vpop.f32.mrb[0].mxu0
        %v1535 = vadd.f32 %v1234, %v1534
        %v1536 = vpop.f32.mrb[0].mxu0
        %1537 = vmatprep.mubr.f32.mxu0 0.0
        %v1538 = vand.u32 %v583, 4294901760
        %v1539 = vsub.f32 %v583, %v1538
        %1540 = vmatmul.mubr.f32.gmra.mrb[0].mxu0 %v1539
        %v1541 = vpop.f32.mrb[0].mxu0
        %v1542 = vadd.f32 %v1240, %v1541
        %v1543 = vpop.f32.mrb[0].mxu0
        %1544 = vmatprep.mubr.f32.mxu0 0.0
        %v1545 = vand.u32 %v584, 4294901760
        %v1546 = vsub.f32 %v584, %v1545
        %1547 = vmatmul.mubr.f32.gmra.mrb[0].mxu0 %v1546
        %v1548 = vpop.f32.mrb[0].mxu0
        %v1549 = vadd.f32 %v1246, %v1548
        %v1550 = vpop.f32.mrb[0].mxu0
        %1551 = vmatprep.mubr.f32.mxu0 0.0
        %v1552 = vand.u32 %v585, 4294901760
        %v1553 = vsub.f32 %v585, %v1552
        %1554 = vmatmul.mubr.f32.gmra.mrb[0].mxu0 %v1553
        %v1555 = vpop.f32.mrb[0].mxu0
        %v1556 = vadd.f32 %v1252, %v1555
        %v1557 = vpop.f32.mrb[0].mxu0
        %1558 = vmatprep.mubr.f32.mxu0 0.0
        %v1559 = vand.u32 %v586, 4294901760
        %v1560 = vsub.f32 %v586, %v1559
        %1561 = vmatmul.mubr.f32.gmra.mrb[0].mxu0 %v1560
        %v1562 = vpop.f32.mrb[0].mxu0
        %v1563 = vadd.f32 %v1258, %v1562
        %v1564 = vpop.f32.mrb[0].mxu0
        %1565 = vmatprep.mubr.f32.mxu0 0.0
        %v1566 = vand.u32 %v587, 4294901760
        %v1567 = vsub.f32 %v587, %v1566
        %1568 = vmatmul.mubr.f32.gmra.mrb[0].mxu0 %v1567
        %v1569 = vpop.f32.mrb[0].mxu0
        %v1570 = vadd.f32 %v1264, %v1569
        %v1571 = vpop.f32.mrb[0].mxu0
        %1572 = vmatprep.mubr.f32.mxu0 0.0
        %v1573 = vand.u32 %v588, 4294901760
        %v1574 = vsub.f32 %v588, %v1573
        %1575 = vmatmul.mubr.f32.gmra.mrb[0].mxu0 %v1574
        %v1576 = vpop.f32.mrb[0].mxu0
        %v1577 = vadd.f32 %v1270, %v1576
        %v1578 = vpop.f32.mrb[0].mxu0
        %1579 = vmatprep.mubr.f32.mxu0 0.0
        %v1580 = vand.u32 %v589, 4294901760
        %v1581 = vsub.f32 %v589, %v1580
        %1582 = vmatmul.mubr.f32.gmra.mrb[0].mxu0 %v1581
        %v1583 = vpop.f32.mrb[0].mxu0
        %v1584 = vadd.f32 %v1276, %v1583
        %v1585 = vpop.f32.mrb[0].mxu0
        %1586 = vmatprep.mubr.f32.mxu0 0.0
        %v1587 = vand.u32 %v590, 4294901760
        %v1588 = vsub.f32 %v590, %v1587
        %1589 = vmatmul.mubr.f32.gmra.mrb[0].mxu0 %v1588
        %v1590 = vpop.f32.mrb[0].mxu0
        %v1591 = vadd.f32 %v1282, %v1590
        %v1592 = vpop.f32.mrb[0].mxu0
        %1593 = vmatprep.mubr.f32.mxu0 0.0
        %v1594 = vand.u32 %v591, 4294901760
        %v1595 = vsub.f32 %v591, %v1594
        %1596 = vmatmul.mubr.f32.gmra.mrb[0].mxu0 %v1595
        %v1597 = vpop.f32.mrb[0].mxu0
        %v1598 = vadd.f32 %v1288, %v1597
        %v1599 = vpop.f32.mrb[0].mxu0
        %1600 = vmatprep.mubr.f32.mxu0 0.0
        %v1601 = vand.u32 %v592, 4294901760
        %v1602 = vsub.f32 %v592, %v1601
        %1603 = vmatmul.mubr.f32.gmra.mrb[0].mxu0 %v1602
        %v1604 = vpop.f32.mrb[0].mxu0
        %v1605 = vadd.f32 %v1294, %v1604
        %v1606 = vpop.f32.mrb[0].mxu0
        %1607 = vmatprep.mubr.f32.mxu0 0.0
        %v1608 = vand.u32 %v593, 4294901760
        %v1609 = vsub.f32 %v593, %v1608
        %1610 = vmatmul.mubr.f32.gmra.mrb[0].mxu0 %v1609
        %v1611 = vpop.f32.mrb[0].mxu0
        %v1612 = vadd.f32 %v1300, %v1611
        %v1613 = vpop.f32.mrb[0].mxu0
        %1614 = vmatprep.mubr.f32.mxu0 0.0
        %v1615 = vand.u32 %v594, 4294901760
        %v1616 = vsub.f32 %v594, %v1615
        %1617 = vmatmul.mubr.f32.gmra.mrb[0].mxu0 %v1616
        %v1618 = vpop.f32.mrb[0].mxu0
        %v1619 = vadd.f32 %v1306, %v1618
        %v1620 = vpop.f32.mrb[0].mxu0
        %1621 = vmatprep.mubr.f32.mxu0 0.0
        %v1622 = vand.u32 %v595, 4294901760
        %v1623 = vsub.f32 %v595, %v1622
        %1624 = vmatmul.mubr.f32.gmra.mrb[0].mxu0 %v1623
        %v1625 = vpop.f32.mrb[0].mxu0
        %v1626 = vadd.f32 %v1312, %v1625
        %v1627 = vpop.f32.mrb[0].mxu0
        %1628 = vmatprep.mubr.f32.mxu0 0.0
        %v1629 = vand.u32 %v596, 4294901760
        %v1630 = vsub.f32 %v596, %v1629
        %1631 = vmatmul.mubr.f32.gmra.mrb[0].mxu0 %v1630
        %v1632 = vpop.f32.mrb[0].mxu0
        %v1633 = vadd.f32 %v1318, %v1632
        %v1634 = vpop.f32.mrb[0].mxu0
        %1635 = vmatprep.mubr.f32.mxu0 0.0
        %v1636 = vand.u32 %v597, 4294901760
        %v1637 = vsub.f32 %v597, %v1636
        %1638 = vmatmul.mubr.f32.gmra.mrb[0].mxu0 %v1637
        %v1639 = vpop.f32.mrb[0].mxu0
        %v1640 = vadd.f32 %v1324, %v1639
        %v1641 = vpop.f32.mrb[0].mxu0
        %1642 = vmatprep.mubr.f32.mxu0 0.0
        %v1643 = vand.u32 %v598, 4294901760
        %v1644 = vsub.f32 %v598, %v1643
        %1645 = vmatmul.mubr.f32.gmra.mrb[0].mxu0 %v1644
        %v1646 = vpop.f32.mrb[0].mxu0
        %v1647 = vadd.f32 %v1330, %v1646
        %v1648 = vpop.f32.mrb[0].mxu0
        %1649 = vmatprep.mubr.f32.mxu0 0.0
        %v1650 = vand.u32 %v599, 4294901760
        %v1651 = vsub.f32 %v599, %v1650
        %1652 = vmatmul.mubr.f32.gmra.mrb[0].mxu0 %v1651
        %v1653 = vpop.f32.mrb[0].mxu0
        %v1654 = vadd.f32 %v1336, %v1653
        %v1655 = vpop.f32.mrb[0].mxu0
        %1656 = vmatprep.mubr.f32.mxu0 0.0
        %v1657 = vand.u32 %v600, 4294901760
        %v1658 = vsub.f32 %v600, %v1657
        %1659 = vmatmul.mubr.f32.gmra.mrb[0].mxu0 %v1658
        %v1660 = vpop.f32.mrb[0].mxu0
        %v1661 = vadd.f32 %v1342, %v1660
        %v1662 = vpop.f32.mrb[0].mxu0
        %1663 = vmatprep.mubr.f32.mxu0 0.0
        %v1664 = vand.u32 %v601, 4294901760
        %v1665 = vsub.f32 %v601, %v1664
        %1666 = vmatmul.mubr.f32.gmra.mrb[0].mxu0 %v1665
        %v1667 = vpop.f32.mrb[0].mxu0
        %v1668 = vadd.f32 %v1348, %v1667
        %v1669 = vpop.f32.mrb[0].mxu0
        %1670 = vmatprep.mubr.f32.mxu0 0.0
        %v1671 = vand.u32 %v602, 4294901760
        %v1672 = vsub.f32 %v602, %v1671
        %1673 = vmatmul.mubr.f32.gmra.mrb[0].mxu0 %v1672
        %v1674 = vpop.f32.mrb[0].mxu0
        %v1675 = vadd.f32 %v1354, %v1674
        %v1676 = vpop.f32.mrb[0].mxu0
        %1677 = vdwg.mxu0
        %1678 = vmatprep.subr.mxu0 0.0
        %v1679 = vand.u32 %v603, 4294901760
        %1680 = vmatpush1.msra.mxu0 %v1679
        %1681 = vmatprep.subr.mxu0 0.0
        %v1682 = vand.u32 %v604, 4294901760
        %1683 = vmatpush1.msra.mxu0 %v1682
        %1684 = vmatprep.subr.mxu0 0.0
        %v1685 = vand.u32 %v605, 4294901760
        %1686 = vmatpush1.msra.mxu0 %v1685
        %1687 = vmatprep.subr.mxu0 0.0
        %v1688 = vand.u32 %v606, 4294901760
        %1689 = vmatpush1.msra.mxu0 %v1688
        %1690 = vmatprep.subr.mxu0 0.0
        %v1691 = vand.u32 %v607, 4294901760
        %1692 = vmatpush1.msra.mxu0 %v1691
        %1693 = vmatprep.subr.mxu0 0.0
        %v1694 = vand.u32 %v608, 4294901760
        %1695 = vmatpush1.msra.mxu0 %v1694
        %1696 = vmatprep.subr.mxu0 0.0
        %v1697 = vand.u32 %v609, 4294901760
        %1698 = vmatpush1.msra.mxu0 %v1697
        %1699 = vmatprep.subr.mxu0 0.0
        %v1700 = vand.u32 %v610, 4294901760
        %1701 = vmatpush1.msra.mxu0 %v1700
        %1702 = vmatprep.subr.mxu0 0.0
        %v1703 = vand.u32 %v611, 4294901760
        %1704 = vmatpush1.msra.mxu0 %v1703
        %1705 = vmatprep.subr.mxu0 0.0
        %v1706 = vand.u32 %v612, 4294901760
        %1707 = vmatpush1.msra.mxu0 %v1706
        %1708 = vmatprep.subr.mxu0 0.0
        %v1709 = vand.u32 %v613, 4294901760
        %1710 = vmatpush1.msra.mxu0 %v1709
        %1711 = vmatprep.subr.mxu0 0.0
        %v1712 = vand.u32 %v614, 4294901760
        %1713 = vmatpush1.msra.mxu0 %v1712
        %1714 = vmatprep.subr.mxu0 0.0
        %v1715 = vand.u32 %v615, 4294901760
        %1716 = vmatpush1.msra.mxu0 %v1715
        %1717 = vmatprep.subr.mxu0 0.0
        %v1718 = vand.u32 %v616, 4294901760
        %1719 = vmatpush1.msra.mxu0 %v1718
        %1720 = vmatprep.subr.mxu0 0.0
        %v1721 = vand.u32 %v617, 4294901760
        %1722 = vmatpush1.msra.mxu0 %v1721
        %1723 = vmatprep.subr.mxu0 0.0
        %v1724 = vand.u32 %v618, 4294901760
        %1725 = vmatpush1.msra.mxu0 %v1724
        %1726 = vmatprep.subr.mxu0 0.0
        %1727 = vmatpush1.msra.mxu0 0.0
        %1728 = vmatprep.subr.mxu0 0.0
        %1729 = vmatpush1.msra.mxu0 0.0
        %1730 = vmatprep.subr.mxu0 0.0
        %1731 = vmatpush1.msra.mxu0 0.0
        %1732 = vmatprep.subr.mxu0 0.0
        %1733 = vmatpush1.msra.mxu0 0.0
        %1734 = vmatprep.subr.mxu0 0.0
        %1735 = vmatpush1.msra.mxu0 0.0
        %1736 = vmatprep.subr.mxu0 0.0
        %1737 = vmatpush1.msra.mxu0 0.0
        %1738 = vmatprep.subr.mxu0 0.0
        %1739 = vmatpush1.msra.mxu0 0.0
        %1740 = vmatprep.subr.mxu0 0.0
        %1741 = vmatpush1.msra.mxu0 0.0
        %1742 = vmatprep.subr.mxu0 0.0
        %1743 = vmatpush1.msra.mxu0 0.0
        %1744 = vmatprep.subr.mxu0 0.0
        %1745 = vmatpush1.msra.mxu0 0.0
        %1746 = vmatprep.subr.mxu0 0.0
        %1747 = vmatpush1.msra.mxu0 0.0
        %1748 = vmatprep.subr.mxu0 0.0
        %1749 = vmatpush1.msra.mxu0 0.0
        %1750 = vmatprep.subr.mxu0 0.0
        %1751 = vmatpush1.msra.mxu0 0.0
        %1752 = vmatprep.subr.mxu0 0.0
        %1753 = vmatpush1.msra.mxu0 0.0
        %1754 = vmatprep.subr.mxu0 0.0
        %1755 = vmatpush1.msra.mxu0 0.0
        %1756 = vmatprep.subr.mxu0 0.0
        %1757 = vmatpush1.msra.mxu0 0.0
        %1758 = vmatprep.mubr.f32.mxu0 0.0
        %v1759 = vand.u32 %v571, 4294901760
        %v1760 = vsub.f32 %v571, %v1759
        %v1761 = vand.u32 %v1760, 4294901760
        %1762 = vmatmul.mubr.f32.gmra.mrb[0].mxu0 %v1761
        %v1763 = vpop.f32.mrb[0].mxu0
        %v1764 = vadd.f32 %v1458, %v1763
        %v1765 = vpop.f32.mrb[0].mxu0
        %1766 = vmatprep.mubr.f32.mxu0 0.0
        %v1767 = vand.u32 %v572, 4294901760
        %v1768 = vsub.f32 %v572, %v1767
        %v1769 = vand.u32 %v1768, 4294901760
        %1770 = vmatmul.mubr.f32.gmra.mrb[0].mxu0 %v1769
        %v1771 = vpop.f32.mrb[0].mxu0
        %v1772 = vadd.f32 %v1465, %v1771
        %v1773 = vpop.f32.mrb[0].mxu0
        %1774 = vmatprep.mubr.f32.mxu0 0.0
        %v1775 = vand.u32 %v573, 4294901760
        %v1776 = vsub.f32 %v573, %v1775
        %v1777 = vand.u32 %v1776, 4294901760
        %1778 = vmatmul.mubr.f32.gmra.mrb[0].mxu0 %v1777
        %v1779 = vpop.f32.mrb[0].mxu0
        %v1780 = vadd.f32 %v1472, %v1779
        %v1781 = vpop.f32.mrb[0].mxu0
        %1782 = vmatprep.mubr.f32.mxu0 0.0
        %v1783 = vand.u32 %v574, 4294901760
        %v1784 = vsub.f32 %v574, %v1783
        %v1785 = vand.u32 %v1784, 4294901760
        %1786 = vmatmul.mubr.f32.gmra.mrb[0].mxu0 %v1785
        %v1787 = vpop.f32.mrb[0].mxu0
        %v1788 = vadd.f32 %v1479, %v1787
        %v1789 = vpop.f32.mrb[0].mxu0
        %1790 = vmatprep.mubr.f32.mxu0 0.0
        %v1791 = vand.u32 %v575, 4294901760
        %v1792 = vsub.f32 %v575, %v1791
        %v1793 = vand.u32 %v1792, 4294901760
        %1794 = vmatmul.mubr.f32.gmra.mrb[0].mxu0 %v1793
        %v1795 = vpop.f32.mrb[0].mxu0
        %v1796 = vadd.f32 %v1486, %v1795
        %v1797 = vpop.f32.mrb[0].mxu0
        %1798 = vmatprep.mubr.f32.mxu0 0.0
        %v1799 = vand.u32 %v576, 4294901760
        %v1800 = vsub.f32 %v576, %v1799
        %v1801 = vand.u32 %v1800, 4294901760
        %1802 = vmatmul.mubr.f32.gmra.mrb[0].mxu0 %v1801
        %v1803 = vpop.f32.mrb[0].mxu0
        %v1804 = vadd.f32 %v1493, %v1803
        %v1805 = vpop.f32.mrb[0].mxu0
        %1806 = vmatprep.mubr.f32.mxu0 0.0
        %v1807 = vand.u32 %v577, 4294901760
        %v1808 = vsub.f32 %v577, %v1807
        %v1809 = vand.u32 %v1808, 4294901760
        %1810 = vmatmul.mubr.f32.gmra.mrb[0].mxu0 %v1809
        %v1811 = vpop.f32.mrb[0].mxu0
        %v1812 = vadd.f32 %v1500, %v1811
        %v1813 = vpop.f32.mrb[0].mxu0
        %1814 = vmatprep.mubr.f32.mxu0 0.0
        %v1815 = vand.u32 %v578, 4294901760
        %v1816 = vsub.f32 %v578, %v1815
        %v1817 = vand.u32 %v1816, 4294901760
        %1818 = vmatmul.mubr.f32.gmra.mrb[0].mxu0 %v1817
        %v1819 = vpop.f32.mrb[0].mxu0
        %v1820 = vadd.f32 %v1507, %v1819
        %v1821 = vpop.f32.mrb[0].mxu0
        %1822 = vmatprep.mubr.f32.mxu0 0.0
        %v1823 = vand.u32 %v579, 4294901760
        %v1824 = vsub.f32 %v579, %v1823
        %v1825 = vand.u32 %v1824, 4294901760
        %1826 = vmatmul.mubr.f32.gmra.mrb[0].mxu0 %v1825
        %v1827 = vpop.f32.mrb[0].mxu0
        %v1828 = vadd.f32 %v1514, %v1827
        %v1829 = vpop.f32.mrb[0].mxu0
        %1830 = vmatprep.mubr.f32.mxu0 0.0
        %v1831 = vand.u32 %v580, 4294901760
        %v1832 = vsub.f32 %v580, %v1831
        %v1833 = vand.u32 %v1832, 4294901760
        %1834 = vmatmul.mubr.f32.gmra.mrb[0].mxu0 %v1833
        %v1835 = vpop.f32.mrb[0].mxu0
        %v1836 = vadd.f32 %v1521, %v1835
        %v1837 = vpop.f32.mrb[0].mxu0
        %1838 = vmatprep.mubr.f32.mxu0 0.0
        %v1839 = vand.u32 %v581, 4294901760
        %v1840 = vsub.f32 %v581, %v1839
        %v1841 = vand.u32 %v1840, 4294901760
        %1842 = vmatmul.mubr.f32.gmra.mrb[0].mxu0 %v1841
        %v1843 = vpop.f32.mrb[0].mxu0
        %v1844 = vadd.f32 %v1528, %v1843
        %v1845 = vpop.f32.mrb[0].mxu0
        %1846 = vmatprep.mubr.f32.mxu0 0.0
        %v1847 = vand.u32 %v582, 4294901760
        %v1848 = vsub.f32 %v582, %v1847
        %v1849 = vand.u32 %v1848, 4294901760
        %1850 = vmatmul.mubr.f32.gmra.mrb[0].mxu0 %v1849
        %v1851 = vpop.f32.mrb[0].mxu0
        %v1852 = vadd.f32 %v1535, %v1851
        %v1853 = vpop.f32.mrb[0].mxu0
        %1854 = vmatprep.mubr.f32.mxu0 0.0
        %v1855 = vand.u32 %v583, 4294901760
        %v1856 = vsub.f32 %v583, %v1855
        %v1857 = vand.u32 %v1856, 4294901760
        %1858 = vmatmul.mubr.f32.gmra.mrb[0].mxu0 %v1857
        %v1859 = vpop.f32.mrb[0].mxu0
        %v1860 = vadd.f32 %v1542, %v1859
        %v1861 = vpop.f32.mrb[0].mxu0
        %1862 = vmatprep.mubr.f32.mxu0 0.0
        %v1863 = vand.u32 %v584, 4294901760
        %v1864 = vsub.f32 %v584, %v1863
        %v1865 = vand.u32 %v1864, 4294901760
        %1866 = vmatmul.mubr.f32.gmra.mrb[0].mxu0 %v1865
        %v1867 = vpop.f32.mrb[0].mxu0
        %v1868 = vadd.f32 %v1549, %v1867
        %v1869 = vpop.f32.mrb[0].mxu0
        %1870 = vmatprep.mubr.f32.mxu0 0.0
        %v1871 = vand.u32 %v585, 4294901760
        %v1872 = vsub.f32 %v585, %v1871
        %v1873 = vand.u32 %v1872, 4294901760
        %1874 = vmatmul.mubr.f32.gmra.mrb[0].mxu0 %v1873
        %v1875 = vpop.f32.mrb[0].mxu0
        %v1876 = vadd.f32 %v1556, %v1875
        %v1877 = vpop.f32.mrb[0].mxu0
        %1878 = vmatprep.mubr.f32.mxu0 0.0
        %v1879 = vand.u32 %v586, 4294901760
        %v1880 = vsub.f32 %v586, %v1879
        %v1881 = vand.u32 %v1880, 4294901760
        %1882 = vmatmul.mubr.f32.gmra.mrb[0].mxu0 %v1881
        %v1883 = vpop.f32.mrb[0].mxu0
        %v1884 = vadd.f32 %v1563, %v1883
        %v1885 = vpop.f32.mrb[0].mxu0
        %1886 = vmatprep.mubr.f32.mxu0 0.0
        %v1887 = vand.u32 %v587, 4294901760
        %v1888 = vsub.f32 %v587, %v1887
        %v1889 = vand.u32 %v1888, 4294901760
        %1890 = vmatmul.mubr.f32.gmra.mrb[0].mxu0 %v1889
        %v1891 = vpop.f32.mrb[0].mxu0
        %v1892 = vadd.f32 %v1570, %v1891
        %v1893 = vpop.f32.mrb[0].mxu0
        %1894 = vmatprep.mubr.f32.mxu0 0.0
        %v1895 = vand.u32 %v588, 4294901760
        %v1896 = vsub.f32 %v588, %v1895
        %v1897 = vand.u32 %v1896, 4294901760
        %1898 = vmatmul.mubr.f32.gmra.mrb[0].mxu0 %v1897
        %v1899 = vpop.f32.mrb[0].mxu0
        %v1900 = vadd.f32 %v1577, %v1899
        %v1901 = vpop.f32.mrb[0].mxu0
        %1902 = vmatprep.mubr.f32.mxu0 0.0
        %v1903 = vand.u32 %v589, 4294901760
        %v1904 = vsub.f32 %v589, %v1903
        %v1905 = vand.u32 %v1904, 4294901760
        %1906 = vmatmul.mubr.f32.gmra.mrb[0].mxu0 %v1905
        %v1907 = vpop.f32.mrb[0].mxu0
        %v1908 = vadd.f32 %v1584, %v1907
        %v1909 = vpop.f32.mrb[0].mxu0
        %1910 = vmatprep.mubr.f32.mxu0 0.0
        %v1911 = vand.u32 %v590, 4294901760
        %v1912 = vsub.f32 %v590, %v1911
        %v1913 = vand.u32 %v1912, 4294901760
        %1914 = vmatmul.mubr.f32.gmra.mrb[0].mxu0 %v1913
        %v1915 = vpop.f32.mrb[0].mxu0
        %v1916 = vadd.f32 %v1591, %v1915
        %v1917 = vpop.f32.mrb[0].mxu0
        %1918 = vmatprep.mubr.f32.mxu0 0.0
        %v1919 = vand.u32 %v591, 4294901760
        %v1920 = vsub.f32 %v591, %v1919
        %v1921 = vand.u32 %v1920, 4294901760
        %1922 = vmatmul.mubr.f32.gmra.mrb[0].mxu0 %v1921
        %v1923 = vpop.f32.mrb[0].mxu0
        %v1924 = vadd.f32 %v1598, %v1923
        %v1925 = vpop.f32.mrb[0].mxu0
        %1926 = vmatprep.mubr.f32.mxu0 0.0
        %v1927 = vand.u32 %v592, 4294901760
        %v1928 = vsub.f32 %v592, %v1927
        %v1929 = vand.u32 %v1928, 4294901760
        %1930 = vmatmul.mubr.f32.gmra.mrb[0].mxu0 %v1929
        %v1931 = vpop.f32.mrb[0].mxu0
        %v1932 = vadd.f32 %v1605, %v1931
        %v1933 = vpop.f32.mrb[0].mxu0
        %1934 = vmatprep.mubr.f32.mxu0 0.0
        %v1935 = vand.u32 %v593, 4294901760
        %v1936 = vsub.f32 %v593, %v1935
        %v1937 = vand.u32 %v1936, 4294901760
        %1938 = vmatmul.mubr.f32.gmra.mrb[0].mxu0 %v1937
        %v1939 = vpop.f32.mrb[0].mxu0
        %v1940 = vadd.f32 %v1612, %v1939
        %v1941 = vpop.f32.mrb[0].mxu0
        %1942 = vmatprep.mubr.f32.mxu0 0.0
        %v1943 = vand.u32 %v594, 4294901760
        %v1944 = vsub.f32 %v594, %v1943
        %v1945 = vand.u32 %v1944, 4294901760
        %1946 = vmatmul.mubr.f32.gmra.mrb[0].mxu0 %v1945
        %v1947 = vpop.f32.mrb[0].mxu0
        %v1948 = vadd.f32 %v1619, %v1947
        %v1949 = vpop.f32.mrb[0].mxu0
        %1950 = vmatprep.mubr.f32.mxu0 0.0
        %v1951 = vand.u32 %v595, 4294901760
        %v1952 = vsub.f32 %v595, %v1951
        %v1953 = vand.u32 %v1952, 4294901760
        %1954 = vmatmul.mubr.f32.gmra.mrb[0].mxu0 %v1953
        %v1955 = vpop.f32.mrb[0].mxu0
        %v1956 = vadd.f32 %v1626, %v1955
        %v1957 = vpop.f32.mrb[0].mxu0
        %1958 = vmatprep.mubr.f32.mxu0 0.0
        %v1959 = vand.u32 %v596, 4294901760
        %v1960 = vsub.f32 %v596, %v1959
        %v1961 = vand.u32 %v1960, 4294901760
        %1962 = vmatmul.mubr.f32.gmra.mrb[0].mxu0 %v1961
        %v1963 = vpop.f32.mrb[0].mxu0
        %v1964 = vadd.f32 %v1633, %v1963
        %v1965 = vpop.f32.mrb[0].mxu0
        %1966 = vmatprep.mubr.f32.mxu0 0.0
        %v1967 = vand.u32 %v597, 4294901760
        %v1968 = vsub.f32 %v597, %v1967
        %v1969 = vand.u32 %v1968, 4294901760
        %1970 = vmatmul.mubr.f32.gmra.mrb[0].mxu0 %v1969
        %v1971 = vpop.f32.mrb[0].mxu0
        %v1972 = vadd.f32 %v1640, %v1971
        %v1973 = vpop.f32.mrb[0].mxu0
        %1974 = vmatprep.mubr.f32.mxu0 0.0
        %v1975 = vand.u32 %v598, 4294901760
        %v1976 = vsub.f32 %v598, %v1975
        %v1977 = vand.u32 %v1976, 4294901760
        %1978 = vmatmul.mubr.f32.gmra.mrb[0].mxu0 %v1977
        %v1979 = vpop.f32.mrb[0].mxu0
        %v1980 = vadd.f32 %v1647, %v1979
        %v1981 = vpop.f32.mrb[0].mxu0
        %1982 = vmatprep.mubr.f32.mxu0 0.0
        %v1983 = vand.u32 %v599, 4294901760
        %v1984 = vsub.f32 %v599, %v1983
        %v1985 = vand.u32 %v1984, 4294901760
        %1986 = vmatmul.mubr.f32.gmra.mrb[0].mxu0 %v1985
        %v1987 = vpop.f32.mrb[0].mxu0
        %v1988 = vadd.f32 %v1654, %v1987
        %v1989 = vpop.f32.mrb[0].mxu0
        %1990 = vmatprep.mubr.f32.mxu0 0.0
        %v1991 = vand.u32 %v600, 4294901760
        %v1992 = vsub.f32 %v600, %v1991
        %v1993 = vand.u32 %v1992, 4294901760
        %1994 = vmatmul.mubr.f32.gmra.mrb[0].mxu0 %v1993
        %v1995 = vpop.f32.mrb[0].mxu0
        %v1996 = vadd.f32 %v1661, %v1995
        %v1997 = vpop.f32.mrb[0].mxu0
        %1998 = vmatprep.mubr.f32.mxu0 0.0
        %v1999 = vand.u32 %v601, 4294901760
        %v2000 = vsub.f32 %v601, %v1999
        %v2001 = vand.u32 %v2000, 4294901760
        %2002 = vmatmul.mubr.f32.gmra.mrb[0].mxu0 %v2001
        %v2003 = vpop.f32.mrb[0].mxu0
        %v2004 = vadd.f32 %v1668, %v2003
        %v2005 = vpop.f32.mrb[0].mxu0
        %2006 = vmatprep.mubr.f32.mxu0 0.0
        %v2007 = vand.u32 %v602, 4294901760
        %v2008 = vsub.f32 %v602, %v2007
        %v2009 = vand.u32 %v2008, 4294901760
        %2010 = vmatmul.mubr.f32.gmra.mrb[0].mxu0 %v2009
        %v2011 = vpop.f32.mrb[0].mxu0
        %v2012 = vadd.f32 %v1675, %v2011
        %v2013 = vpop.f32.mrb[0].mxu0
        %2014 = vdwg.mxu0
        %2015 = vmatprep.subr.mxu0 0.0
        %v2016 = vand.u32 %v603, 4294901760
        %v2017 = vsub.f32 %v603, %v2016
        %v2018 = vand.u32 %v2017, 4294901760
        %2019 = vmatpush1.msra.mxu0 %v2018
        %2020 = vmatprep.subr.mxu0 0.0
        %v2021 = vand.u32 %v604, 4294901760
        %v2022 = vsub.f32 %v604, %v2021
        %v2023 = vand.u32 %v2022, 4294901760
        %2024 = vmatpush1.msra.mxu0 %v2023
        %2025 = vmatprep.subr.mxu0 0.0
        %v2026 = vand.u32 %v605, 4294901760
        %v2027 = vsub.f32 %v605, %v2026
        %v2028 = vand.u32 %v2027, 4294901760
        %2029 = vmatpush1.msra.mxu0 %v2028
        %2030 = vmatprep.subr.mxu0 0.0
        %v2031 = vand.u32 %v606, 4294901760
        %v2032 = vsub.f32 %v606, %v2031
        %v2033 = vand.u32 %v2032, 4294901760
        %2034 = vmatpush1.msra.mxu0 %v2033
        %2035 = vmatprep.subr.mxu0 0.0
        %v2036 = vand.u32 %v607, 4294901760
        %v2037 = vsub.f32 %v607, %v2036
        %v2038 = vand.u32 %v2037, 4294901760
        %2039 = vmatpush1.msra.mxu0 %v2038
        %2040 = vmatprep.subr.mxu0 0.0
        %v2041 = vand.u32 %v608, 4294901760
        %v2042 = vsub.f32 %v608, %v2041
        %v2043 = vand.u32 %v2042, 4294901760
        %2044 = vmatpush1.msra.mxu0 %v2043
        %2045 = vmatprep.subr.mxu0 0.0
        %v2046 = vand.u32 %v609, 4294901760
        %v2047 = vsub.f32 %v609, %v2046
        %v2048 = vand.u32 %v2047, 4294901760
        %2049 = vmatpush1.msra.mxu0 %v2048
        %2050 = vmatprep.subr.mxu0 0.0
        %v2051 = vand.u32 %v610, 4294901760
        %v2052 = vsub.f32 %v610, %v2051
        %v2053 = vand.u32 %v2052, 4294901760
        %2054 = vmatpush1.msra.mxu0 %v2053
        %2055 = vmatprep.subr.mxu0 0.0
        %v2056 = vand.u32 %v611, 4294901760
        %v2057 = vsub.f32 %v611, %v2056
        %v2058 = vand.u32 %v2057, 4294901760
        %2059 = vmatpush1.msra.mxu0 %v2058
        %2060 = vmatprep.subr.mxu0 0.0
        %v2061 = vand.u32 %v612, 4294901760
        %v2062 = vsub.f32 %v612, %v2061
        %v2063 = vand.u32 %v2062, 4294901760
        %2064 = vmatpush1.msra.mxu0 %v2063
        %2065 = vmatprep.subr.mxu0 0.0
        %v2066 = vand.u32 %v613, 4294901760
        %v2067 = vsub.f32 %v613, %v2066
        %v2068 = vand.u32 %v2067, 4294901760
        %2069 = vmatpush1.msra.mxu0 %v2068
        %2070 = vmatprep.subr.mxu0 0.0
        %v2071 = vand.u32 %v614, 4294901760
        %v2072 = vsub.f32 %v614, %v2071
        %v2073 = vand.u32 %v2072, 4294901760
        %2074 = vmatpush1.msra.mxu0 %v2073
        %2075 = vmatprep.subr.mxu0 0.0
        %v2076 = vand.u32 %v615, 4294901760
        %v2077 = vsub.f32 %v615, %v2076
        %v2078 = vand.u32 %v2077, 4294901760
        %2079 = vmatpush1.msra.mxu0 %v2078
        %2080 = vmatprep.subr.mxu0 0.0
        %v2081 = vand.u32 %v616, 4294901760
        %v2082 = vsub.f32 %v616, %v2081
        %v2083 = vand.u32 %v2082, 4294901760
        %2084 = vmatpush1.msra.mxu0 %v2083
        %2085 = vmatprep.subr.mxu0 0.0
        %v2086 = vand.u32 %v617, 4294901760
        %v2087 = vsub.f32 %v617, %v2086
        %v2088 = vand.u32 %v2087, 4294901760
        %2089 = vmatpush1.msra.mxu0 %v2088
        %2090 = vmatprep.subr.mxu0 0.0
        %v2091 = vand.u32 %v618, 4294901760
        %v2092 = vsub.f32 %v618, %v2091
        %v2093 = vand.u32 %v2092, 4294901760
        %2094 = vmatpush1.msra.mxu0 %v2093
        %2095 = vmatprep.subr.mxu0 0.0
        %2096 = vmatpush1.msra.mxu0 0.0
        %2097 = vmatprep.subr.mxu0 0.0
        %2098 = vmatpush1.msra.mxu0 0.0
        %2099 = vmatprep.subr.mxu0 0.0
        %2100 = vmatpush1.msra.mxu0 0.0
        %2101 = vmatprep.subr.mxu0 0.0
        %2102 = vmatpush1.msra.mxu0 0.0
        %2103 = vmatprep.subr.mxu0 0.0
        %2104 = vmatpush1.msra.mxu0 0.0
        %2105 = vmatprep.subr.mxu0 0.0
        %2106 = vmatpush1.msra.mxu0 0.0
        %2107 = vmatprep.subr.mxu0 0.0
        %2108 = vmatpush1.msra.mxu0 0.0
        %2109 = vmatprep.subr.mxu0 0.0
        %2110 = vmatpush1.msra.mxu0 0.0
        %2111 = vmatprep.subr.mxu0 0.0
        %2112 = vmatpush1.msra.mxu0 0.0
        %2113 = vmatprep.subr.mxu0 0.0
        %2114 = vmatpush1.msra.mxu0 0.0
        %2115 = vmatprep.subr.mxu0 0.0
        %2116 = vmatpush1.msra.mxu0 0.0
        %2117 = vmatprep.subr.mxu0 0.0
        %2118 = vmatpush1.msra.mxu0 0.0
        %2119 = vmatprep.subr.mxu0 0.0
        %2120 = vmatpush1.msra.mxu0 0.0
        %2121 = vmatprep.subr.mxu0 0.0
        %2122 = vmatpush1.msra.mxu0 0.0
        %2123 = vmatprep.subr.mxu0 0.0
        %2124 = vmatpush1.msra.mxu0 0.0
        %2125 = vmatprep.subr.mxu0 0.0
        %2126 = vmatpush1.msra.mxu0 0.0
        %2127 = vmatprep.mubr.f32.mxu0 0.0
        %v2128 = vand.u32 %v571, 4294901760
        %2129 = vmatmul.mubr.f32.gmra.mrb[0].mxu0 %v2128
        %v2130 = vpop.f32.mrb[0].mxu0
        %v2131 = vadd.f32 %v1764, %v2130
        %v2132 = vpop.f32.mrb[0].mxu0
        %2133 = vmatprep.mubr.f32.mxu0 0.0
        %v2134 = vand.u32 %v572, 4294901760
        %2135 = vmatmul.mubr.f32.gmra.mrb[0].mxu0 %v2134
        %v2136 = vpop.f32.mrb[0].mxu0
        %v2137 = vadd.f32 %v1772, %v2136
        %v2138 = vpop.f32.mrb[0].mxu0
        %2139 = vmatprep.mubr.f32.mxu0 0.0
        %v2140 = vand.u32 %v573, 4294901760
        %2141 = vmatmul.mubr.f32.gmra.mrb[0].mxu0 %v2140
        %v2142 = vpop.f32.mrb[0].mxu0
        %v2143 = vadd.f32 %v1780, %v2142
        %v2144 = vpop.f32.mrb[0].mxu0
        %2145 = vmatprep.mubr.f32.mxu0 0.0
        %v2146 = vand.u32 %v574, 4294901760
        %2147 = vmatmul.mubr.f32.gmra.mrb[0].mxu0 %v2146
        %v2148 = vpop.f32.mrb[0].mxu0
        %v2149 = vadd.f32 %v1788, %v2148
        %v2150 = vpop.f32.mrb[0].mxu0
        %2151 = vmatprep.mubr.f32.mxu0 0.0
        %v2152 = vand.u32 %v575, 4294901760
        %2153 = vmatmul.mubr.f32.gmra.mrb[0].mxu0 %v2152
        %v2154 = vpop.f32.mrb[0].mxu0
        %v2155 = vadd.f32 %v1796, %v2154
        %v2156 = vpop.f32.mrb[0].mxu0
        %2157 = vmatprep.mubr.f32.mxu0 0.0
        %v2158 = vand.u32 %v576, 4294901760
        %2159 = vmatmul.mubr.f32.gmra.mrb[0].mxu0 %v2158
        %v2160 = vpop.f32.mrb[0].mxu0
        %v2161 = vadd.f32 %v1804, %v2160
        %v2162 = vpop.f32.mrb[0].mxu0
        %2163 = vmatprep.mubr.f32.mxu0 0.0
        %v2164 = vand.u32 %v577, 4294901760
        %2165 = vmatmul.mubr.f32.gmra.mrb[0].mxu0 %v2164
        %v2166 = vpop.f32.mrb[0].mxu0
        %v2167 = vadd.f32 %v1812, %v2166
        %v2168 = vpop.f32.mrb[0].mxu0
        %2169 = vmatprep.mubr.f32.mxu0 0.0
        %v2170 = vand.u32 %v578, 4294901760
        %2171 = vmatmul.mubr.f32.gmra.mrb[0].mxu0 %v2170
        %v2172 = vpop.f32.mrb[0].mxu0
        %v2173 = vadd.f32 %v1820, %v2172
        %v2174 = vpop.f32.mrb[0].mxu0
        %2175 = vmatprep.mubr.f32.mxu0 0.0
        %v2176 = vand.u32 %v579, 4294901760
        %2177 = vmatmul.mubr.f32.gmra.mrb[0].mxu0 %v2176
        %v2178 = vpop.f32.mrb[0].mxu0
        %v2179 = vadd.f32 %v1828, %v2178
        %v2180 = vpop.f32.mrb[0].mxu0
        %2181 = vmatprep.mubr.f32.mxu0 0.0
        %v2182 = vand.u32 %v580, 4294901760
        %2183 = vmatmul.mubr.f32.gmra.mrb[0].mxu0 %v2182
        %v2184 = vpop.f32.mrb[0].mxu0
        %v2185 = vadd.f32 %v1836, %v2184
        %v2186 = vpop.f32.mrb[0].mxu0
        %2187 = vmatprep.mubr.f32.mxu0 0.0
        %v2188 = vand.u32 %v581, 4294901760
        %2189 = vmatmul.mubr.f32.gmra.mrb[0].mxu0 %v2188
        %v2190 = vpop.f32.mrb[0].mxu0
        %v2191 = vadd.f32 %v1844, %v2190
        %v2192 = vpop.f32.mrb[0].mxu0
        %2193 = vmatprep.mubr.f32.mxu0 0.0
        %v2194 = vand.u32 %v582, 4294901760
        %2195 = vmatmul.mubr.f32.gmra.mrb[0].mxu0 %v2194
        %v2196 = vpop.f32.mrb[0].mxu0
        %v2197 = vadd.f32 %v1852, %v2196
        %v2198 = vpop.f32.mrb[0].mxu0
        %2199 = vmatprep.mubr.f32.mxu0 0.0
        %v2200 = vand.u32 %v583, 4294901760
        %2201 = vmatmul.mubr.f32.gmra.mrb[0].mxu0 %v2200
        %v2202 = vpop.f32.mrb[0].mxu0
        %v2203 = vadd.f32 %v1860, %v2202
        %v2204 = vpop.f32.mrb[0].mxu0
        %2205 = vmatprep.mubr.f32.mxu0 0.0
        %v2206 = vand.u32 %v584, 4294901760
        %2207 = vmatmul.mubr.f32.gmra.mrb[0].mxu0 %v2206
        %v2208 = vpop.f32.mrb[0].mxu0
        %v2209 = vadd.f32 %v1868, %v2208
        %v2210 = vpop.f32.mrb[0].mxu0
        %2211 = vmatprep.mubr.f32.mxu0 0.0
        %v2212 = vand.u32 %v585, 4294901760
        %2213 = vmatmul.mubr.f32.gmra.mrb[0].mxu0 %v2212
        %v2214 = vpop.f32.mrb[0].mxu0
        %v2215 = vadd.f32 %v1876, %v2214
        %v2216 = vpop.f32.mrb[0].mxu0
        %2217 = vmatprep.mubr.f32.mxu0 0.0
        %v2218 = vand.u32 %v586, 4294901760
        %2219 = vmatmul.mubr.f32.gmra.mrb[0].mxu0 %v2218
        %v2220 = vpop.f32.mrb[0].mxu0
        %v2221 = vadd.f32 %v1884, %v2220
        %v2222 = vpop.f32.mrb[0].mxu0
        %2223 = vmatprep.mubr.f32.mxu0 0.0
        %v2224 = vand.u32 %v587, 4294901760
        %2225 = vmatmul.mubr.f32.gmra.mrb[0].mxu0 %v2224
        %v2226 = vpop.f32.mrb[0].mxu0
        %v2227 = vadd.f32 %v1892, %v2226
        %v2228 = vpop.f32.mrb[0].mxu0
        %2229 = vmatprep.mubr.f32.mxu0 0.0
        %v2230 = vand.u32 %v588, 4294901760
        %2231 = vmatmul.mubr.f32.gmra.mrb[0].mxu0 %v2230
        %v2232 = vpop.f32.mrb[0].mxu0
        %v2233 = vadd.f32 %v1900, %v2232
        %v2234 = vpop.f32.mrb[0].mxu0
        %2235 = vmatprep.mubr.f32.mxu0 0.0
        %v2236 = vand.u32 %v589, 4294901760
        %2237 = vmatmul.mubr.f32.gmra.mrb[0].mxu0 %v2236
        %v2238 = vpop.f32.mrb[0].mxu0
        %v2239 = vadd.f32 %v1908, %v2238
        %v2240 = vpop.f32.mrb[0].mxu0
        %2241 = vmatprep.mubr.f32.mxu0 0.0
        %v2242 = vand.u32 %v590, 4294901760
        %2243 = vmatmul.mubr.f32.gmra.mrb[0].mxu0 %v2242
        %v2244 = vpop.f32.mrb[0].mxu0
        %v2245 = vadd.f32 %v1916, %v2244
        %v2246 = vpop.f32.mrb[0].mxu0
        %2247 = vmatprep.mubr.f32.mxu0 0.0
        %v2248 = vand.u32 %v591, 4294901760
        %2249 = vmatmul.mubr.f32.gmra.mrb[0].mxu0 %v2248
        %v2250 = vpop.f32.mrb[0].mxu0
        %v2251 = vadd.f32 %v1924, %v2250
        %v2252 = vpop.f32.mrb[0].mxu0
        %2253 = vmatprep.mubr.f32.mxu0 0.0
        %v2254 = vand.u32 %v592, 4294901760
        %2255 = vmatmul.mubr.f32.gmra.mrb[0].mxu0 %v2254
        %v2256 = vpop.f32.mrb[0].mxu0
        %v2257 = vadd.f32 %v1932, %v2256
        %v2258 = vpop.f32.mrb[0].mxu0
        %2259 = vmatprep.mubr.f32.mxu0 0.0
        %v2260 = vand.u32 %v593, 4294901760
        %2261 = vmatmul.mubr.f32.gmra.mrb[0].mxu0 %v2260
        %v2262 = vpop.f32.mrb[0].mxu0
        %v2263 = vadd.f32 %v1940, %v2262
        %v2264 = vpop.f32.mrb[0].mxu0
        %2265 = vmatprep.mubr.f32.mxu0 0.0
        %v2266 = vand.u32 %v594, 4294901760
        %2267 = vmatmul.mubr.f32.gmra.mrb[0].mxu0 %v2266
        %v2268 = vpop.f32.mrb[0].mxu0
        %v2269 = vadd.f32 %v1948, %v2268
        %v2270 = vpop.f32.mrb[0].mxu0
        %2271 = vmatprep.mubr.f32.mxu0 0.0
        %v2272 = vand.u32 %v595, 4294901760
        %2273 = vmatmul.mubr.f32.gmra.mrb[0].mxu0 %v2272
        %v2274 = vpop.f32.mrb[0].mxu0
        %v2275 = vadd.f32 %v1956, %v2274
        %v2276 = vpop.f32.mrb[0].mxu0
        %2277 = vmatprep.mubr.f32.mxu0 0.0
        %v2278 = vand.u32 %v596, 4294901760
        %2279 = vmatmul.mubr.f32.gmra.mrb[0].mxu0 %v2278
        %v2280 = vpop.f32.mrb[0].mxu0
        %v2281 = vadd.f32 %v1964, %v2280
        %v2282 = vpop.f32.mrb[0].mxu0
        %2283 = vmatprep.mubr.f32.mxu0 0.0
        %v2284 = vand.u32 %v597, 4294901760
        %2285 = vmatmul.mubr.f32.gmra.mrb[0].mxu0 %v2284
        %v2286 = vpop.f32.mrb[0].mxu0
        %v2287 = vadd.f32 %v1972, %v2286
        %v2288 = vpop.f32.mrb[0].mxu0
        %2289 = vmatprep.mubr.f32.mxu0 0.0
        %v2290 = vand.u32 %v598, 4294901760
        %2291 = vmatmul.mubr.f32.gmra.mrb[0].mxu0 %v2290
        %v2292 = vpop.f32.mrb[0].mxu0
        %v2293 = vadd.f32 %v1980, %v2292
        %v2294 = vpop.f32.mrb[0].mxu0
        %2295 = vmatprep.mubr.f32.mxu0 0.0
        %v2296 = vand.u32 %v599, 4294901760
        %2297 = vmatmul.mubr.f32.gmra.mrb[0].mxu0 %v2296
        %v2298 = vpop.f32.mrb[0].mxu0
        %v2299 = vadd.f32 %v1988, %v2298
        %v2300 = vpop.f32.mrb[0].mxu0
        %2301 = vmatprep.mubr.f32.mxu0 0.0
        %v2302 = vand.u32 %v600, 4294901760
        %2303 = vmatmul.mubr.f32.gmra.mrb[0].mxu0 %v2302
        %v2304 = vpop.f32.mrb[0].mxu0
        %v2305 = vadd.f32 %v1996, %v2304
        %v2306 = vpop.f32.mrb[0].mxu0
        %2307 = vmatprep.mubr.f32.mxu0 0.0
        %v2308 = vand.u32 %v601, 4294901760
        %2309 = vmatmul.mubr.f32.gmra.mrb[0].mxu0 %v2308
        %v2310 = vpop.f32.mrb[0].mxu0
        %v2311 = vadd.f32 %v2004, %v2310
        %v2312 = vpop.f32.mrb[0].mxu0
        %2313 = vmatprep.mubr.f32.mxu0 0.0
        %v2314 = vand.u32 %v602, 4294901760
        %2315 = vmatmul.mubr.f32.gmra.mrb[0].mxu0 %v2314
        %v2316 = vpop.f32.mrb[0].mxu0
        %v2317 = vadd.f32 %v2012, %v2316
        %v2318 = vpop.f32.mrb[0].mxu0
        %2319 = vdwg.mxu0
        %2320 = vmatprep.subr.mxu0 0.0
        %v2321 = vand.u32 %v603, 4294901760
        %2322 = vmatpush1.msra.mxu0 %v2321
        %2323 = vmatprep.subr.mxu0 0.0
        %v2324 = vand.u32 %v604, 4294901760
        %2325 = vmatpush1.msra.mxu0 %v2324
        %2326 = vmatprep.subr.mxu0 0.0
        %v2327 = vand.u32 %v605, 4294901760
        %2328 = vmatpush1.msra.mxu0 %v2327
        %2329 = vmatprep.subr.mxu0 0.0
        %v2330 = vand.u32 %v606, 4294901760
        %2331 = vmatpush1.msra.mxu0 %v2330
        %2332 = vmatprep.subr.mxu0 0.0
        %v2333 = vand.u32 %v607, 4294901760
        %2334 = vmatpush1.msra.mxu0 %v2333
        %2335 = vmatprep.subr.mxu0 0.0
        %v2336 = vand.u32 %v608, 4294901760
        %2337 = vmatpush1.msra.mxu0 %v2336
        %2338 = vmatprep.subr.mxu0 0.0
        %v2339 = vand.u32 %v609, 4294901760
        %2340 = vmatpush1.msra.mxu0 %v2339
        %2341 = vmatprep.subr.mxu0 0.0
        %v2342 = vand.u32 %v610, 4294901760
        %2343 = vmatpush1.msra.mxu0 %v2342
        %2344 = vmatprep.subr.mxu0 0.0
        %v2345 = vand.u32 %v611, 4294901760
        %2346 = vmatpush1.msra.mxu0 %v2345
        %2347 = vmatprep.subr.mxu0 0.0
        %v2348 = vand.u32 %v612, 4294901760
        %2349 = vmatpush1.msra.mxu0 %v2348
        %2350 = vmatprep.subr.mxu0 0.0
        %v2351 = vand.u32 %v613, 4294901760
        %2352 = vmatpush1.msra.mxu0 %v2351
        %2353 = vmatprep.subr.mxu0 0.0
        %v2354 = vand.u32 %v614, 4294901760
        %2355 = vmatpush1.msra.mxu0 %v2354
        %2356 = vmatprep.subr.mxu0 0.0
        %v2357 = vand.u32 %v615, 4294901760
        %2358 = vmatpush1.msra.mxu0 %v2357
        %2359 = vmatprep.subr.mxu0 0.0
        %v2360 = vand.u32 %v616, 4294901760
        %2361 = vmatpush1.msra.mxu0 %v2360
        %2362 = vmatprep.subr.mxu0 0.0
        %v2363 = vand.u32 %v617, 4294901760
        %2364 = vmatpush1.msra.mxu0 %v2363
        %2365 = vmatprep.subr.mxu0 0.0
        %v2366 = vand.u32 %v618, 4294901760
        %2367 = vmatpush1.msra.mxu0 %v2366
        %2368 = vmatprep.subr.mxu0 0.0
        %2369 = vmatpush1.msra.mxu0 0.0
        %2370 = vmatprep.subr.mxu0 0.0
        %2371 = vmatpush1.msra.mxu0 0.0
        %2372 = vmatprep.subr.mxu0 0.0
        %2373 = vmatpush1.msra.mxu0 0.0
        %2374 = vmatprep.subr.mxu0 0.0
        %2375 = vmatpush1.msra.mxu0 0.0
        %2376 = vmatprep.subr.mxu0 0.0
        %2377 = vmatpush1.msra.mxu0 0.0
        %2378 = vmatprep.subr.mxu0 0.0
        %2379 = vmatpush1.msra.mxu0 0.0
        %2380 = vmatprep.subr.mxu0 0.0
        %2381 = vmatpush1.msra.mxu0 0.0
        %2382 = vmatprep.subr.mxu0 0.0
        %2383 = vmatpush1.msra.mxu0 0.0
        %2384 = vmatprep.subr.mxu0 0.0
        %2385 = vmatpush1.msra.mxu0 0.0
        %2386 = vmatprep.subr.mxu0 0.0
        %2387 = vmatpush1.msra.mxu0 0.0
        %2388 = vmatprep.subr.mxu0 0.0
        %2389 = vmatpush1.msra.mxu0 0.0
        %2390 = vmatprep.subr.mxu0 0.0
        %2391 = vmatpush1.msra.mxu0 0.0
        %2392 = vmatprep.subr.mxu0 0.0
        %2393 = vmatpush1.msra.mxu0 0.0
        %2394 = vmatprep.subr.mxu0 0.0
        %2395 = vmatpush1.msra.mxu0 0.0
        %2396 = vmatprep.subr.mxu0 0.0
        %2397 = vmatpush1.msra.mxu0 0.0
        %2398 = vmatprep.subr.mxu0 0.0
        %2399 = vmatpush1.msra.mxu0 0.0
        %2400 = vmatprep.mubr.f32.mxu0 0.0
        %v2401 = vand.u32 %v571, 4294901760
        %2402 = vmatmul.mubr.f32.gmra.mrb[0].mxu0 %v2401
        %v2403 = vpop.f32.mrb[0].mxu0
        %v2404 = vadd.f32 %v2131, %v2403
        %v2405 = vpop.f32.mrb[0].mxu0
        %2406 = vmatprep.mubr.f32.mxu0 0.0
        %v2407 = vand.u32 %v572, 4294901760
        %2408 = vmatmul.mubr.f32.gmra.mrb[0].mxu0 %v2407
        %v2409 = vpop.f32.mrb[0].mxu0
        %v2410 = vadd.f32 %v2137, %v2409
        %v2411 = vpop.f32.mrb[0].mxu0
        %2412 = vmatprep.mubr.f32.mxu0 0.0
        %v2413 = vand.u32 %v573, 4294901760
        %2414 = vmatmul.mubr.f32.gmra.mrb[0].mxu0 %v2413
        %v2415 = vpop.f32.mrb[0].mxu0
        %v2416 = vadd.f32 %v2143, %v2415
        %v2417 = vpop.f32.mrb[0].mxu0
        %2418 = vmatprep.mubr.f32.mxu0 0.0
        %v2419 = vand.u32 %v574, 4294901760
        %2420 = vmatmul.mubr.f32.gmra.mrb[0].mxu0 %v2419
        %v2421 = vpop.f32.mrb[0].mxu0
        %v2422 = vadd.f32 %v2149, %v2421
        %v2423 = vpop.f32.mrb[0].mxu0
        %2424 = vmatprep.mubr.f32.mxu0 0.0
        %v2425 = vand.u32 %v575, 4294901760
        %2426 = vmatmul.mubr.f32.gmra.mrb[0].mxu0 %v2425
        %v2427 = vpop.f32.mrb[0].mxu0
        %v2428 = vadd.f32 %v2155, %v2427
        %v2429 = vpop.f32.mrb[0].mxu0
        %2430 = vmatprep.mubr.f32.mxu0 0.0
        %v2431 = vand.u32 %v576, 4294901760
        %2432 = vmatmul.mubr.f32.gmra.mrb[0].mxu0 %v2431
        %v2433 = vpop.f32.mrb[0].mxu0
        %v2434 = vadd.f32 %v2161, %v2433
        %v2435 = vpop.f32.mrb[0].mxu0
        %2436 = vmatprep.mubr.f32.mxu0 0.0
        %v2437 = vand.u32 %v577, 4294901760
        %2438 = vmatmul.mubr.f32.gmra.mrb[0].mxu0 %v2437
        %v2439 = vpop.f32.mrb[0].mxu0
        %v2440 = vadd.f32 %v2167, %v2439
        %v2441 = vpop.f32.mrb[0].mxu0
        %2442 = vmatprep.mubr.f32.mxu0 0.0
        %v2443 = vand.u32 %v578, 4294901760
        %2444 = vmatmul.mubr.f32.gmra.mrb[0].mxu0 %v2443
        %v2445 = vpop.f32.mrb[0].mxu0
        %v2446 = vadd.f32 %v2173, %v2445
        %v2447 = vpop.f32.mrb[0].mxu0
        %2448 = vmatprep.mubr.f32.mxu0 0.0
        %v2449 = vand.u32 %v579, 4294901760
        %2450 = vmatmul.mubr.f32.gmra.mrb[0].mxu0 %v2449
        %v2451 = vpop.f32.mrb[0].mxu0
        %v2452 = vadd.f32 %v2179, %v2451
        %v2453 = vpop.f32.mrb[0].mxu0
        %2454 = vmatprep.mubr.f32.mxu0 0.0
        %v2455 = vand.u32 %v580, 4294901760
        %2456 = vmatmul.mubr.f32.gmra.mrb[0].mxu0 %v2455
        %v2457 = vpop.f32.mrb[0].mxu0
        %v2458 = vadd.f32 %v2185, %v2457
        %v2459 = vpop.f32.mrb[0].mxu0
        %2460 = vmatprep.mubr.f32.mxu0 0.0
        %v2461 = vand.u32 %v581, 4294901760
        %2462 = vmatmul.mubr.f32.gmra.mrb[0].mxu0 %v2461
        %v2463 = vpop.f32.mrb[0].mxu0
        %v2464 = vadd.f32 %v2191, %v2463
        %v2465 = vpop.f32.mrb[0].mxu0
        %2466 = vmatprep.mubr.f32.mxu0 0.0
        %v2467 = vand.u32 %v582, 4294901760
        %2468 = vmatmul.mubr.f32.gmra.mrb[0].mxu0 %v2467
        %v2469 = vpop.f32.mrb[0].mxu0
        %v2470 = vadd.f32 %v2197, %v2469
        %v2471 = vpop.f32.mrb[0].mxu0
        %2472 = vmatprep.mubr.f32.mxu0 0.0
        %v2473 = vand.u32 %v583, 4294901760
        %2474 = vmatmul.mubr.f32.gmra.mrb[0].mxu0 %v2473
        %v2475 = vpop.f32.mrb[0].mxu0
        %v2476 = vadd.f32 %v2203, %v2475
        %v2477 = vpop.f32.mrb[0].mxu0
        %2478 = vmatprep.mubr.f32.mxu0 0.0
        %v2479 = vand.u32 %v584, 4294901760
        %2480 = vmatmul.mubr.f32.gmra.mrb[0].mxu0 %v2479
        %v2481 = vpop.f32.mrb[0].mxu0
        %v2482 = vadd.f32 %v2209, %v2481
        %v2483 = vpop.f32.mrb[0].mxu0
        %2484 = vmatprep.mubr.f32.mxu0 0.0
        %v2485 = vand.u32 %v585, 4294901760
        %2486 = vmatmul.mubr.f32.gmra.mrb[0].mxu0 %v2485
        %v2487 = vpop.f32.mrb[0].mxu0
        %v2488 = vadd.f32 %v2215, %v2487
        %v2489 = vpop.f32.mrb[0].mxu0
        %2490 = vmatprep.mubr.f32.mxu0 0.0
        %v2491 = vand.u32 %v586, 4294901760
        %2492 = vmatmul.mubr.f32.gmra.mrb[0].mxu0 %v2491
        %v2493 = vpop.f32.mrb[0].mxu0
        %v2494 = vadd.f32 %v2221, %v2493
        %v2495 = vpop.f32.mrb[0].mxu0
        %2496 = vmatprep.mubr.f32.mxu0 0.0
        %v2497 = vand.u32 %v587, 4294901760
        %2498 = vmatmul.mubr.f32.gmra.mrb[0].mxu0 %v2497
        %v2499 = vpop.f32.mrb[0].mxu0
        %v2500 = vadd.f32 %v2227, %v2499
        %v2501 = vpop.f32.mrb[0].mxu0
        %2502 = vmatprep.mubr.f32.mxu0 0.0
        %v2503 = vand.u32 %v588, 4294901760
        %2504 = vmatmul.mubr.f32.gmra.mrb[0].mxu0 %v2503
        %v2505 = vpop.f32.mrb[0].mxu0
        %v2506 = vadd.f32 %v2233, %v2505
        %v2507 = vpop.f32.mrb[0].mxu0
        %2508 = vmatprep.mubr.f32.mxu0 0.0
        %v2509 = vand.u32 %v589, 4294901760
        %2510 = vmatmul.mubr.f32.gmra.mrb[0].mxu0 %v2509
        %v2511 = vpop.f32.mrb[0].mxu0
        %v2512 = vadd.f32 %v2239, %v2511
        %v2513 = vpop.f32.mrb[0].mxu0
        %2514 = vmatprep.mubr.f32.mxu0 0.0
        %v2515 = vand.u32 %v590, 4294901760
        %2516 = vmatmul.mubr.f32.gmra.mrb[0].mxu0 %v2515
        %v2517 = vpop.f32.mrb[0].mxu0
        %v2518 = vadd.f32 %v2245, %v2517
        %v2519 = vpop.f32.mrb[0].mxu0
        %2520 = vmatprep.mubr.f32.mxu0 0.0
        %v2521 = vand.u32 %v591, 4294901760
        %2522 = vmatmul.mubr.f32.gmra.mrb[0].mxu0 %v2521
        %v2523 = vpop.f32.mrb[0].mxu0
        %v2524 = vadd.f32 %v2251, %v2523
        %v2525 = vpop.f32.mrb[0].mxu0
        %2526 = vmatprep.mubr.f32.mxu0 0.0
        %v2527 = vand.u32 %v592, 4294901760
        %2528 = vmatmul.mubr.f32.gmra.mrb[0].mxu0 %v2527
        %v2529 = vpop.f32.mrb[0].mxu0
        %v2530 = vadd.f32 %v2257, %v2529
        %v2531 = vpop.f32.mrb[0].mxu0
        %2532 = vmatprep.mubr.f32.mxu0 0.0
        %v2533 = vand.u32 %v593, 4294901760
        %2534 = vmatmul.mubr.f32.gmra.mrb[0].mxu0 %v2533
        %v2535 = vpop.f32.mrb[0].mxu0
        %v2536 = vadd.f32 %v2263, %v2535
        %v2537 = vpop.f32.mrb[0].mxu0
        %2538 = vmatprep.mubr.f32.mxu0 0.0
        %v2539 = vand.u32 %v594, 4294901760
        %2540 = vmatmul.mubr.f32.gmra.mrb[0].mxu0 %v2539
        %v2541 = vpop.f32.mrb[0].mxu0
        %v2542 = vadd.f32 %v2269, %v2541
        %v2543 = vpop.f32.mrb[0].mxu0
        %2544 = vmatprep.mubr.f32.mxu0 0.0
        %v2545 = vand.u32 %v595, 4294901760
        %2546 = vmatmul.mubr.f32.gmra.mrb[0].mxu0 %v2545
        %v2547 = vpop.f32.mrb[0].mxu0
        %v2548 = vadd.f32 %v2275, %v2547
        %v2549 = vpop.f32.mrb[0].mxu0
        %2550 = vmatprep.mubr.f32.mxu0 0.0
        %v2551 = vand.u32 %v596, 4294901760
        %2552 = vmatmul.mubr.f32.gmra.mrb[0].mxu0 %v2551
        %v2553 = vpop.f32.mrb[0].mxu0
        %v2554 = vadd.f32 %v2281, %v2553
        %v2555 = vpop.f32.mrb[0].mxu0
        %2556 = vmatprep.mubr.f32.mxu0 0.0
        %v2557 = vand.u32 %v597, 4294901760
        %2558 = vmatmul.mubr.f32.gmra.mrb[0].mxu0 %v2557
        %v2559 = vpop.f32.mrb[0].mxu0
        %v2560 = vadd.f32 %v2287, %v2559
        %v2561 = vpop.f32.mrb[0].mxu0
        %2562 = vmatprep.mubr.f32.mxu0 0.0
        %v2563 = vand.u32 %v598, 4294901760
        %2564 = vmatmul.mubr.f32.gmra.mrb[0].mxu0 %v2563
        %v2565 = vpop.f32.mrb[0].mxu0
        %v2566 = vadd.f32 %v2293, %v2565
        %v2567 = vpop.f32.mrb[0].mxu0
        %2568 = vmatprep.mubr.f32.mxu0 0.0
        %v2569 = vand.u32 %v599, 4294901760
        %2570 = vmatmul.mubr.f32.gmra.mrb[0].mxu0 %v2569
        %v2571 = vpop.f32.mrb[0].mxu0
        %v2572 = vadd.f32 %v2299, %v2571
        %v2573 = vpop.f32.mrb[0].mxu0
        %2574 = vmatprep.mubr.f32.mxu0 0.0
        %v2575 = vand.u32 %v600, 4294901760
        %2576 = vmatmul.mubr.f32.gmra.mrb[0].mxu0 %v2575
        %v2577 = vpop.f32.mrb[0].mxu0
        %v2578 = vadd.f32 %v2305, %v2577
        %v2579 = vpop.f32.mrb[0].mxu0
        %2580 = vmatprep.mubr.f32.mxu0 0.0
        %v2581 = vand.u32 %v601, 4294901760
        %2582 = vmatmul.mubr.f32.gmra.mrb[0].mxu0 %v2581
        %v2583 = vpop.f32.mrb[0].mxu0
        %v2584 = vadd.f32 %v2311, %v2583
        %v2585 = vpop.f32.mrb[0].mxu0
        %2586 = vmatprep.mubr.f32.mxu0 0.0
        %v2587 = vand.u32 %v602, 4294901760
        %2588 = vmatmul.mubr.f32.gmra.mrb[0].mxu0 %v2587
        %v2589 = vpop.f32.mrb[0].mxu0
        %v2590 = vadd.f32 %v2317, %v2589
        %v2591 = vpop.f32.mrb[0].mxu0
        %2592 = vdwg.mxu0
        %v2593 = vld [vmem:[%s246] sm:$0xff]
        %v2594 = vld [vmem:[%s246 + $0x8] sm:$0xff]
        %v2595 = vld [vmem:[%s246 + $0x10] sm:$0xff]
        %v2596 = vld [vmem:[%s246 + $0x18] sm:$0xff]
        %v2597 = vld [vmem:[%s246 + $0x20] sm:$0xff]
        %v2598 = vld [vmem:[%s246 + $0x28] sm:$0xff]
        %v2599 = vld [vmem:[%s246 + $0x30] sm:$0xff]
        %v2600 = vld [vmem:[%s246 + $0x38] sm:$0xff]
        %v2601 = vld [vmem:[%s246 + $0x40] sm:$0xff]
        %v2602 = vld [vmem:[%s246 + $0x48] sm:$0xff]
        %v2603 = vld [vmem:[%s246 + $0x50] sm:$0xff]
        %v2604 = vld [vmem:[%s246 + $0x58] sm:$0xff]
        %v2605 = vld [vmem:[%s246 + $0x60] sm:$0xff]
        %v2606 = vld [vmem:[%s246 + $0x68] sm:$0xff]
        %v2607 = vld [vmem:[%s246 + $0x70] sm:$0xff]
        %v2608 = vld [vmem:[%s246 + $0x78] sm:$0xff]
        %v2609 = vld [vmem:[%s246 + $0x80] sm:$0xff]
        %v2610 = vld [vmem:[%s246 + $0x88] sm:$0xff]
        %v2611 = vld [vmem:[%s246 + $0x90] sm:$0xff]
        %v2612 = vld [vmem:[%s246 + $0x98] sm:$0xff]
        %v2613 = vld [vmem:[%s246 + $0xa0] sm:$0xff]
        %v2614 = vld [vmem:[%s246 + $0xa8] sm:$0xff]
        %v2615 = vld [vmem:[%s246 + $0xb0] sm:$0xff]
        %v2616 = vld [vmem:[%s246 + $0xb8] sm:$0xff]
        %v2617 = vld [vmem:[%s246 + $0xc0] sm:$0xff]
        %v2618 = vld [vmem:[%s246 + $0xc8] sm:$0xff]
        %v2619 = vld [vmem:[%s246 + $0xd0] sm:$0xff]
        %v2620 = vld [vmem:[%s246 + $0xd8] sm:$0xff]
        %v2621 = vld [vmem:[%s246 + $0xe0] sm:$0xff]
        %v2622 = vld [vmem:[%s246 + $0xe8] sm:$0xff]
        %v2623 = vld [vmem:[%s246 + $0xf0] sm:$0xff]
        %v2624 = vld [vmem:[%s246 + $0xf8] sm:$0xff]
        %v2625 = vmul.f32 %v2593, 11.313708
        %v2626 = vmul.f32 %v2594, 11.313708
        %v2627 = vmul.f32 %v2595, 11.313708
        %v2628 = vmul.f32 %v2596, 11.313708
        %v2629 = vmul.f32 %v2597, 11.313708
        %v2630 = vmul.f32 %v2598, 11.313708
        %v2631 = vmul.f32 %v2599, 11.313708
        %v2632 = vmul.f32 %v2600, 11.313708
        %v2633 = vmul.f32 %v2601, 11.313708
        %v2634 = vmul.f32 %v2602, 11.313708
        %v2635 = vmul.f32 %v2603, 11.313708
        %v2636 = vmul.f32 %v2604, 11.313708
        %v2637 = vmul.f32 %v2605, 11.313708
        %v2638 = vmul.f32 %v2606, 11.313708
        %v2639 = vmul.f32 %v2607, 11.313708
        %v2640 = vmul.f32 %v2608, 11.313708
        %v2641 = vmul.f32 %v2609, 11.313708
        %v2642 = vmul.f32 %v2610, 11.313708
        %v2643 = vmul.f32 %v2611, 11.313708
        %v2644 = vmul.f32 %v2612, 11.313708
        %v2645 = vmul.f32 %v2613, 11.313708
        %v2646 = vmul.f32 %v2614, 11.313708
        %v2647 = vmul.f32 %v2615, 11.313708
        %v2648 = vmul.f32 %v2616, 11.313708
        %v2649 = vmul.f32 %v2617, 11.313708
        %v2650 = vmul.f32 %v2618, 11.313708
        %v2651 = vmul.f32 %v2619, 11.313708
        %v2652 = vmul.f32 %v2620, 11.313708
        %v2653 = vmul.f32 %v2621, 11.313708
        %v2654 = vmul.f32 %v2622, 11.313708
        %v2655 = vmul.f32 %v2623, 11.313708
        %v2656 = vmul.f32 %v2624, 11.313708
        %v2657 = vadd.f32 %v2625, %v2404
        %v2658 = vadd.f32 %v2626, %v2410
        %v2659 = vadd.f32 %v2627, %v2416
        %v2660 = vadd.f32 %v2628, %v2422
        %v2661 = vadd.f32 %v2629, %v2428
        %v2662 = vadd.f32 %v2630, %v2434
        %v2663 = vadd.f32 %v2631, %v2440
        %v2664 = vadd.f32 %v2632, %v2446
        %v2665 = vadd.f32 %v2633, %v2452
        %v2666 = vadd.f32 %v2634, %v2458
        %v2667 = vadd.f32 %v2635, %v2464
        %v2668 = vadd.f32 %v2636, %v2470
        %v2669 = vadd.f32 %v2637, %v2476
        %v2670 = vadd.f32 %v2638, %v2482
        %v2671 = vadd.f32 %v2639, %v2488
        %v2672 = vadd.f32 %v2640, %v2494
        %v2673 = vadd.f32 %v2641, %v2500
        %v2674 = vadd.f32 %v2642, %v2506
        %v2675 = vadd.f32 %v2643, %v2512
        %v2676 = vadd.f32 %v2644, %v2518
        %v2677 = vadd.f32 %v2645, %v2524
        %v2678 = vadd.f32 %v2646, %v2530
        %v2679 = vadd.f32 %v2647, %v2536
        %v2680 = vadd.f32 %v2648, %v2542
        %v2681 = vadd.f32 %v2649, %v2548
        %v2682 = vadd.f32 %v2650, %v2554
        %v2683 = vadd.f32 %v2651, %v2560
        %v2684 = vadd.f32 %v2652, %v2566
        %v2685 = vadd.f32 %v2653, %v2572
        %v2686 = vadd.f32 %v2654, %v2578
        %v2687 = vadd.f32 %v2655, %v2584
        %v2688 = vadd.f32 %v2656, %v2590
        %2689 = vst [vmem:[%s228] sm:$0xff] %v2657
        %2690 = vst [vmem:[%s228 + $0x8] sm:$0xff] %v2658
        %2691 = vst [vmem:[%s228 + $0x10] sm:$0xff] %v2659
        %2692 = vst [vmem:[%s228 + $0x18] sm:$0xff] %v2660
        %2693 = vst [vmem:[%s228 + $0x20] sm:$0xff] %v2661
        %2694 = vst [vmem:[%s228 + $0x28] sm:$0xff] %v2662
        %2695 = vst [vmem:[%s228 + $0x30] sm:$0xff] %v2663
        %2696 = vst [vmem:[%s228 + $0x38] sm:$0xff] %v2664
        %2697 = vst [vmem:[%s228 + $0x40] sm:$0xff] %v2665
        %2698 = vst [vmem:[%s228 + $0x48] sm:$0xff] %v2666
        %2699 = vst [vmem:[%s228 + $0x50] sm:$0xff] %v2667
        %2700 = vst [vmem:[%s228 + $0x58] sm:$0xff] %v2668
        %2701 = vst [vmem:[%s228 + $0x60] sm:$0xff] %v2669
        %2702 = vst [vmem:[%s228 + $0x68] sm:$0xff] %v2670
        %2703 = vst [vmem:[%s228 + $0x70] sm:$0xff] %v2671
        %2704 = vst [vmem:[%s228 + $0x78] sm:$0xff] %v2672
        %2705 = vst [vmem:[%s228 + $0x80] sm:$0xff] %v2673
        %2706 = vst [vmem:[%s228 + $0x88] sm:$0xff] %v2674
        %2707 = vst [vmem:[%s228 + $0x90] sm:$0xff] %v2675
        %2708 = vst [vmem:[%s228 + $0x98] sm:$0xff] %v2676
        %2709 = vst [vmem:[%s228 + $0xa0] sm:$0xff] %v2677
        %2710 = vst [vmem:[%s228 + $0xa8] sm:$0xff] %v2678
        %2711 = vst [vmem:[%s228 + $0xb0] sm:$0xff] %v2679
        %2712 = vst [vmem:[%s228 + $0xb8] sm:$0xff] %v2680
        %2713 = vst [vmem:[%s228 + $0xc0] sm:$0xff] %v2681
        %2714 = vst [vmem:[%s228 + $0xc8] sm:$0xff] %v2682
        %2715 = vst [vmem:[%s228 + $0xd0] sm:$0xff] %v2683
        %2716 = vst [vmem:[%s228 + $0xd8] sm:$0xff] %v2684
        %2717 = vst [vmem:[%s228 + $0xe0] sm:$0xff] %v2685
        %2718 = vst [vmem:[%s228 + $0xe8] sm:$0xff] %v2686
        %2719 = vst [vmem:[%s228 + $0xf0] sm:$0xff] %v2687
        %2720 = vst [vmem:[%s228 + $0xf8] sm:$0xff] %v2688
        %s2721 = sand.u32 %s117, 1
        %s2722 = scalar_lea.sflag [#allocation4], %s2721
        %s2723 = sand.u32 %s117, 1
        %s2724 = smul.addr %s2723, 256
        %s2725 = scalar_lea.vmem [#allocation5], %s2724
        // Predicated region
        $region37: #{tpu_custom_call.1} parent=31 // pred_check
          %p2726 = pneg %p127
        $region38: #{tpu_custom_call.1} parent=31 // pred_check_branch
          %2728 = sbr.rel (%p2726) target = $region40
        $region39: #{tpu_custom_call.1} parent=31 // pred_region
          %s2729 = smul.u32 32, %s23
          %s2731 = ssub.s32 4096, 4096
          %2732 = vsyncadd %s2722, %s2731
          %s2733 = smul.addr %s22, 128
          %s2734 = sadd.s32 %s2729, %s2733
          %s2735 = smul.addr %s2734, 128
          %s2736 = scalar_lea.hbm %s3, %s2735
          %s2737 = sshll.u32 %s2725, 4
          %s2738 = int_to_ptr.vmem [resolvable:$true] %s2737
          %2743 = dma.vmem_to_hbm [thread:$0]  %s2738, 4096, %s2736, %s2722, 128, 128, 8
        $region40: #{tpu_custom_call.1} parent=31 // pred_fallthru
          _
      $region32: #{tpu_custom_call.1} parent=5 // pred_fallthru
        _
      %p2744 = scmp.le.s32.totalorder 2, %s13
      // Predicated region
      $region41: #{tpu_custom_call.1} parent=5 // pred_check
        %p2745 = pneg %p2744
      $region42: #{tpu_custom_call.1} parent=5 // pred_check_branch
        %2747 = sbr.rel (%p2745) target = $region44
      $region43: #{tpu_custom_call.1} parent=5 // pred_region
        %s2748 = ssub.s32 %s13, 2
        // Predicated region
        $region45: #{tpu_custom_call.1} parent=43 // pred_check
          %p2749 = pneg %p133
        $region46: #{tpu_custom_call.1} parent=43 // pred_check_branch
          %2751 = sbr.rel (%p2749) target = $region48
        $region47: #{tpu_custom_call.1} parent=43 // pred_region
          %s2752 = sand.u32 %s118, 1
          %s2753 = scalar_lea.sflag [#allocation4], %s2752
          %s2754 = sand.u32 %s118, 1
          %s2755 = smul.addr %s2754, 256
          %s2756 = scalar_lea.vmem [#allocation5], %s2755
          %2757 = dma.done %s2753, 4096
        $region48: #{tpu_custom_call.1} parent=43 // pred_fallthru
          _
      $region44: #{tpu_custom_call.1} parent=5 // pred_fallthru
        _
    $region6: #{tpu_custom_call.1} parent=1 // loop_footer
      %s17 = sadd.s32 1, %s13
    $region7: #{tpu_custom_call.1} parent=1 // loop_footer_branch
      %12 = sbr.rel target = $region3
    $region8: #{tpu_custom_call.1} parent=1 // loop_exit
      _
    %2758 = vsyncpa [#allocation3], 1
    %s2759 = scalar_lea.sflag [#allocation3], 1
    %2760 = vsyncpa %s2759, 1
    %2761 = vsyncpa [#allocation4], 1
    %s2762 = scalar_lea.sflag [#allocation4], 1
    %2763 = vsyncpa %s2762, 1

</llo_original>
